<compile_context>
chip_gen: v7x
topology: tpu7x:2x2x1
jax: 0.10.0
libtpu: 0.0.40
codegen_flags: <defaults>
</compile_context>

<pallas_src>
import functools

import jax
import jax.numpy as jnp
from jax.experimental import pallas as pl
from jax.experimental.pallas import tpu as pltpu


# ----------------------------- Pallas kernel ------------------------------- #

def fused_backbone_occlusion_kernel(pT_ref, wcT_ref, bc_ref, w1T_ref, b1_ref,
                                    w2c_ref, b2_ref, o_ref):
    # pT_ref : (K, tm)   bf16  im2col patches, transposed (pixels on lanes)
    # wcT_ref: (C, K)    bf16  conv weight
    # bc_ref : (C, 1)    f32   conv bias
    # w1T_ref: (H1, C)   bf16  head Linear1 weight (torch (out,in) layout)
    # b1_ref : (H1, 1)   f32   head Linear1 bias
    # w2c_ref: (H1, 1)   f32   head Linear2 weight as a column
    # b2_ref : (1, 1)    f32   head Linear2 bias
    # o_ref  : (1, tm)   f32   sigmoid occlusion scores (lane-dense)

    # Backbone: conv3x3 as matmul over im2col patches, f32 accumulation.
    feats_t = jnp.dot(wcT_ref[...], pT_ref[...],
                      preferred_element_type=jnp.float32)          # (C, tm)
    feats_t = jnp.maximum(feats_t + bc_ref[...], 0.0)

    # Occlusion head: Linear(C,128) -> ReLU.
    h_t = jnp.dot(w1T_ref[...], feats_t.astype(jnp.bfloat16),
                  preferred_element_type=jnp.float32)               # (H1, tm)
    h_t = jnp.maximum(h_t + b1_ref[...], 0.0)

    # Linear(128,1) as VPU multiply + cross-sublane reduce (skips degenerate MXU op).
    z = jnp.sum(h_t * w2c_ref[...], axis=0, keepdims=True) + b2_ref[...]   # (1, tm)
    o_ref[...] = jax.nn.sigmoid(z).astype(o_ref.dtype)


# ------------------------------ JAX wrappers ------------------------------- #

def _round_up(x, m):
    return (x + m - 1) // m * m


def _choose_tile(m, max_tm=1024):
    """Pick a lane-aligned tile; aim for >=2 parallel grid steps (v7x megacore)."""
    m128 = _round_up(m, 128)
    tm = min(max_tm, max(128, _round_up(m128 // 2, 128)))
    m_pad = _round_up(m128, tm)
    return tm, m_pad


def _im2col_3x3(x_nhwc):
    """3x3, stride 1, pad 1 patches: (N,H,W,Cin) -> (N*H*W, 9*Cin)."""
    n, h, w, c = x_nhwc.shape
    xp = jnp.pad(x_nhwc, ((0, 0), (1, 1), (1, 1), (0, 0)))
    cols = [xp[:, dy:dy + h, dx:dx + w, :] for dy in range(3) for dx in range(3)]
    patches = jnp.concatenate(cols, axis=-1)
    return patches.reshape(n * h * w, 9 * c)


def extended_mask_rcnn_forward(images_nchw, params):
    """Eval-mode forward: {'losses': {}, 'occlusion_scores': (N,1,H,W)}."""
    x = jnp.transpose(images_nchw, (0, 2, 3, 1)).astype(jnp.bfloat16)  # NCHW -> NHWC
    n, h, w, cin = x.shape
    m = n * h * w
    k = 9 * cin
    k_pad = max(32, _round_up(k, 16))          # sublane-aligned contraction dim
    tm, m_pad = _choose_tile(m)
    grid_m = m_pad // tm

    # im2col patches, transposed to (K, M) so pixels land on the lane axis.
    patches_t = _im2col_3x3(x).T                                   # (K, M) bf16
    patches_t = jnp.pad(patches_t, ((0, k_pad - k), (0, m_pad - m)))

    c_feat = params["w_conv"].shape[0]
    hidden = params["w1"].shape[0]

    # Conv weight (Cout, Cin, 3, 3) -> (Cout, 9*Cin) matching patch (dy, dx, cin) order.
    wc_t = params["w_conv"].transpose(0, 2, 3, 1).reshape(c_feat, k)
    wc_t = jnp.pad(wc_t, ((0, 0), (0, k_pad - k))).astype(jnp.bfloat16)
    bc = params["b_conv"].reshape(c_feat, 1).astype(jnp.float32)
    w1_t = params["w1"].astype(jnp.bfloat16)                       # (HIDDEN, C)
    b1 = params["b1"].reshape(hidden, 1).astype(jnp.float32)
    w2_c = params["w2"].reshape(hidden, 1).astype(jnp.float32)     # (1,HIDDEN) -> column
    b2 = params["b2"].reshape(1, 1).astype(jnp.float32)

    out = pl.pallas_call(
        fused_backbone_occlusion_kernel,
        out_shape=jax.ShapeDtypeStruct((1, m_pad), jnp.float32),
        grid_spec=pltpu.PrefetchScalarGridSpec(
            num_scalar_prefetch=0,
            grid=(grid_m,),
            in_specs=[
                pl.BlockSpec((k_pad, tm), lambda i: (0, i)),      # patches^T tile
                pl.BlockSpec((c_feat, k_pad), lambda i: (0, 0)),  # conv weight (resident)
                pl.BlockSpec((c_feat, 1), lambda i: (0, 0)),      # conv bias
                pl.BlockSpec((hidden, c_feat), lambda i: (0, 0)), # head W1
                pl.BlockSpec((hidden, 1), lambda i: (0, 0)),      # head b1
                pl.BlockSpec((hidden, 1), lambda i: (0, 0)),      # head W2 column
                pl.BlockSpec((1, 1), lambda i: (0, 0)),           # head b2
            ],
            out_specs=pl.BlockSpec((1, tm), lambda i: (0, i)),    # lane-dense scores
        ),
        compiler_params=pltpu.CompilerParams(
            dimension_semantics=("parallel",)),
    )(patches_t, wc_t, bc, w1_t, b1, w2_c, b2)

    scores = out[0, :m].reshape(n, h, w)[:, None, :, :]           # (N,1,H,W)
    return {"losses": {}, "occlusion_scores": scores}


# ----------------------------- reference (JAX) ------------------------------ #

def _reference(images_nchw, params):
    x = jnp.transpose(images_nchw, (0, 2, 3, 1)).astype(jnp.bfloat16)
    n, h, w, cin = x.shape
    patches = _im2col_3x3(x).astype(jnp.float32)                  # (M, 9*Cin)
    wc = params["w_conv"].transpose(0, 2, 3, 1).reshape(-1, 9 * cin)
    wc = wc.astype(jnp.bfloat16).astype(jnp.float32)
    feats = jnp.maximum(patches @ wc.T + params["b_conv"][None, :], 0.0)
    feats = feats.astype(jnp.bfloat16).astype(jnp.float32)
    w1 = params["w1"].astype(jnp.bfloat16).astype(jnp.float32)
    hid = jnp.maximum(feats @ w1.T + params["b1"][None, :], 0.0)
    z = hid @ params["w2"].T + params["b2"][None, :]
    scores = jax.nn.sigmoid(z).reshape(n, h, w)[:, None, :, :]
    return scores


# ---------------------------------- main ------------------------------------ #

if __name__ == "__main__":
    key = jax.random.PRNGKey(0)
    ks = jax.random.split(key, 7)

    # Small shapes: batch=2, in channels=3, spatial=32, backbone out channels=32,
    # occlusion-head hidden=128 (as in the module), output=1.
    N, CIN, H, W = 2, 3, 32, 32
    C_FEAT, HIDDEN = 32, 128

    images = jax.random.normal(ks[0], (N, CIN, H, W), dtype=jnp.float32)

    params = {
        "w_conv": 0.1 * jax.random.normal(ks[1], (C_FEAT, CIN, 3, 3), jnp.float32),
        "b_conv": 0.1 * jax.random.normal(ks[2], (C_FEAT,), jnp.float32),
        "w1":     0.1 * jax.random.normal(ks[3], (HIDDEN, C_FEAT), jnp.float32),
        "b1":     0.1 * jax.random.normal(ks[4], (HIDDEN,), jnp.float32),
        "w2":     0.1 * jax.random.normal(ks[5], (1, HIDDEN), jnp.float32),
        "b2":     0.1 * jax.random.normal(ks[6], (1,), jnp.float32),
    }

    fwd = jax.jit(functools.partial(extended_mask_rcnn_forward, params=params))
    out = fwd(images)
    scores = jax.block_until_ready(out["occlusion_scores"])

    ref = _reference(images, params)
    assert scores.shape == (N, 1, H, W), scores.shape
    max_err = float(jnp.max(jnp.abs(scores - ref)))
    assert jnp.allclose(scores, ref, atol=2e-3, rtol=2e-3), f"mismatch vs reference: {max_err}"

    print("KERNEL_OK")
</pallas_src>

<mosaic_0001>
module attributes {stable_mosaic.version = 11 : i64} {
  func.func @fused_backbone_occlusion_kernel(%arg0: i32, %arg1: memref<32x1024xbf16, #tpu.memory_space<vmem>>, %arg2: memref<32x32xbf16, #tpu.memory_space<vmem>>, %arg3: memref<32x1xf32, #tpu.memory_space<vmem>>, %arg4: memref<128x32xbf16, #tpu.memory_space<vmem>>, %arg5: memref<128x1xf32, #tpu.memory_space<vmem>>, %arg6: memref<128x1xf32, #tpu.memory_space<vmem>>, %arg7: memref<1x1xf32, #tpu.memory_space<vmem>>, %arg8: memref<1x1024xf32, #tpu.memory_space<vmem>>) attributes {dimension_semantics = [#tpu.dimension_semantics<parallel>], iteration_bounds = array<i64: 2>, scalar_prefetch = 0 : i64, scratch_operands = 0 : i64, tpu.core_type = #tpu.core_type<tc>, window_params = [{transform_indices = @transform_0, window_bounds = array<i64: 32, 1024>}, {pipeline_mode = #tpu.pipeline_mode<synchronous>, transform_indices = @transform_1, window_bounds = array<i64: 32, 32>}, {pipeline_mode = #tpu.pipeline_mode<synchronous>, transform_indices = @transform_2, window_bounds = array<i64: 32, 1>}, {pipeline_mode = #tpu.pipeline_mode<synchronous>, transform_indices = @transform_3, window_bounds = array<i64: 128, 32>}, {pipeline_mode = #tpu.pipeline_mode<synchronous>, transform_indices = @transform_4, window_bounds = array<i64: 128, 1>}, {pipeline_mode = #tpu.pipeline_mode<synchronous>, transform_indices = @transform_5, window_bounds = array<i64: 128, 1>}, {pipeline_mode = #tpu.pipeline_mode<synchronous>, transform_indices = @transform_6, window_bounds = array<i64: 1, 1>}, {transform_indices = @transform_7, window_bounds = array<i64: 1, 1024>}]} {
    %c0 = arith.constant 0 : index
    %c0_0 = arith.constant 0 : index
    %0 = vector.load %arg2[%c0, %c0_0] : memref<32x32xbf16, #tpu.memory_space<vmem>>, vector<32x32xbf16>
    %c0_1 = arith.constant 0 : index
    %c0_2 = arith.constant 0 : index
    %1 = vector.load %arg1[%c0_1, %c0_2] : memref<32x1024xbf16, #tpu.memory_space<vmem>>, vector<32x1024xbf16>
    %cst = arith.constant dense<0.000000e+00> : vector<32x1024xf32>
    %2 = tpu.matmul %0, %1, %cst {dimension_numbers = #tpu.dot_dimension_numbers<[1], [0], [0], [1], [0, 0, 1, 1], [], []>} : vector<32x32xbf16>, vector<32x1024xbf16>, vector<32x1024xf32> -> vector<32x1024xf32>
    %c0_3 = arith.constant 0 : index
    %c0_4 = arith.constant 0 : index
    %3 = vector.load %arg3[%c0_3, %c0_4] : memref<32x1xf32, #tpu.memory_space<vmem>>, vector<32x1xf32>
    %4 = vector.broadcast %3 : vector<32x1xf32> to vector<32x1024xf32>
    %5 = arith.addf %2, %4 : vector<32x1024xf32>
    %cst_5 = arith.constant 0.000000e+00 : f32
    %6 = vector.broadcast %cst_5 : f32 to vector<32x1024xf32>
    %7 = arith.maximumf %5, %6 : vector<32x1024xf32>
    %c0_6 = arith.constant 0 : index
    %c0_7 = arith.constant 0 : index
    %8 = vector.load %arg4[%c0_6, %c0_7] : memref<128x32xbf16, #tpu.memory_space<vmem>>, vector<128x32xbf16>
    %9 = arith.truncf %7 : vector<32x1024xf32> to vector<32x1024xbf16>
    %cst_8 = arith.constant dense<0.000000e+00> : vector<128x1024xf32>
    %10 = tpu.matmul %8, %9, %cst_8 {dimension_numbers = #tpu.dot_dimension_numbers<[1], [0], [0], [1], [0, 0, 1, 1], [], []>} : vector<128x32xbf16>, vector<32x1024xbf16>, vector<128x1024xf32> -> vector<128x1024xf32>
    %c0_9 = arith.constant 0 : index
    %c0_10 = arith.constant 0 : index
    %11 = vector.load %arg5[%c0_9, %c0_10] : memref<128x1xf32, #tpu.memory_space<vmem>>, vector<128x1xf32>
    %12 = vector.broadcast %11 : vector<128x1xf32> to vector<128x1024xf32>
    %13 = arith.addf %10, %12 : vector<128x1024xf32>
    %cst_11 = arith.constant 0.000000e+00 : f32
    %14 = vector.broadcast %cst_11 : f32 to vector<128x1024xf32>
    %15 = arith.maximumf %13, %14 : vector<128x1024xf32>
    %c0_12 = arith.constant 0 : index
    %c0_13 = arith.constant 0 : index
    %16 = vector.load %arg6[%c0_12, %c0_13] : memref<128x1xf32, #tpu.memory_space<vmem>>, vector<128x1xf32>
    %17 = vector.broadcast %16 : vector<128x1xf32> to vector<128x1024xf32>
    %18 = arith.mulf %15, %17 : vector<128x1024xf32>
    %cst_14 = arith.constant dense<0.000000e+00> : vector<1024xf32>
    %19 = vector.multi_reduction <add>, %18, %cst_14 [0] : vector<128x1024xf32> to vector<1024xf32>
    %20 = vector.shape_cast %19 : vector<1024xf32> to vector<1x1024xf32>
    %c0_15 = arith.constant 0 : index
    %c0_16 = arith.constant 0 : index
    %21 = vector.load %arg7[%c0_15, %c0_16] : memref<1x1xf32, #tpu.memory_space<vmem>>, vector<1x1xf32>
    %22 = vector.broadcast %21 : vector<1x1xf32> to vector<1x1024xf32>
    %23 = arith.addf %20, %22 : vector<1x1024xf32>
    %24 = arith.negf %23 : vector<1x1024xf32>
    %25 = math.exp %24 : vector<1x1024xf32>
    %cst_17 = arith.constant 1.000000e+00 : f32
    %26 = vector.broadcast %cst_17 : f32 to vector<1x1024xf32>
    %27 = arith.addf %26, %25 : vector<1x1024xf32>
    %28 = arith.divf %26, %27 : vector<1x1024xf32>
    %c0_18 = arith.constant 0 : index
    %c0_19 = arith.constant 0 : index
    %29 = vector.load %arg8[%c0_18, %c0_19] : memref<1x1024xf32, #tpu.memory_space<vmem>>, vector<1x1024xf32>
    tpu.vector_store %arg8[%c0_18, %c0_19], %28 {strides = array<i32>} : memref<1x1024xf32, #tpu.memory_space<vmem>>, vector<1x1024xf32>,
    return
  }
  func.func @transform_0(%arg0: i32) -> (i32, i32) {
    %c0_i32 = arith.constant 0 : i32
    %c0_i32_0 = arith.constant 0 : i32
    return %c0_i32, %arg0 : i32, i32
  }
  func.func @transform_1(%arg0: i32) -> (i32, i32) {
    %c0_i32 = arith.constant 0 : i32
    %c0_i32_0 = arith.constant 0 : i32
    %c0_i32_1 = arith.constant 0 : i32
    return %c0_i32, %c0_i32_0 : i32, i32
  }
  func.func @transform_2(%arg0: i32) -> (i32, i32) {
    %c0_i32 = arith.constant 0 : i32
    %c0_i32_0 = arith.constant 0 : i32
    %c0_i32_1 = arith.constant 0 : i32
    return %c0_i32, %c0_i32_0 : i32, i32
  }
  func.func @transform_3(%arg0: i32) -> (i32, i32) {
    %c0_i32 = arith.constant 0 : i32
    %c0_i32_0 = arith.constant 0 : i32
    %c0_i32_1 = arith.constant 0 : i32
    return %c0_i32, %c0_i32_0 : i32, i32
  }
  func.func @transform_4(%arg0: i32) -> (i32, i32) {
    %c0_i32 = arith.constant 0 : i32
    %c0_i32_0 = arith.constant 0 : i32
    %c0_i32_1 = arith.constant 0 : i32
    return %c0_i32, %c0_i32_0 : i32, i32
  }
  func.func @transform_5(%arg0: i32) -> (i32, i32) {
    %c0_i32 = arith.constant 0 : i32
    %c0_i32_0 = arith.constant 0 : i32
    %c0_i32_1 = arith.constant 0 : i32
    return %c0_i32, %c0_i32_0 : i32, i32
  }
  func.func @transform_6(%arg0: i32) -> (i32, i32) {
    %c0_i32 = arith.constant 0 : i32
    %c0_i32_0 = arith.constant 0 : i32
    %c0_i32_1 = arith.constant 0 : i32
    return %c0_i32, %c0_i32_0 : i32, i32
  }
  func.func @transform_7(%arg0: i32) -> (i32, i32) {
    %c0_i32 = arith.constant 0 : i32
    %c0_i32_0 = arith.constant 0 : i32
    return %c0_i32, %arg0 : i32, i32
  }
}

</mosaic_0001>

<llo_original>
// kernel: squeeze.1
$region0: #{squeeze.1}
  %s0 = inlined_call_operand.vmem [shape: f32[2048], index: 0, kind: input, shape index: {}]
  %s1 = inlined_call_operand.hbm [shape: f32[2,1,32,32], index: 1, kind: output, shape index: {}]
  $region1: #{squeeze.1} parent=0
    #allocation0 [shape = 'u8[32768]{0}', space=vmem, size = 0x8000, scoped, tag = 'operand span for operand 1']
    #allocation1 [shape = 's32[1]{0}', space=sflag, size = 0x4, scoped, tag = 'scoped memory for squeeze.1']
    %2 = vsyncpa [#allocation1], 0
    %v3 = vld [vmem:[%s0] sm:$0xff]
    %vm4 = vcmask 261120
    %5 = vst.msk [vmem:[#allocation0] ss:$4 sm:$0xff] %vm4, %v3
    %s6 = scalar_lea.vmem %s0, 8
    %v7 = vld [vmem:[%s6] sm:$0xff]
    %vm8 = vcmask 261120
    %s9 = scalar_lea.vmem [#allocation0], 32
    %10 = vst.msk [vmem:[%s9] ss:$4 sm:$0xff] %vm8, %v7
    %v11 = vld [vmem:[%s0] sm:$0xff]
    %12 = vrot.lane.b32.xlu0 %v11, 96
    %v13 = vpop.permute.xlu0 %12
    %vm14 = vcmask 261120
    %s15 = scalar_lea.vmem [#allocation0], 1
    %16 = vst.msk [vmem:[%s15] ss:$4 sm:$0xff] %vm14, %v13
    %s17 = scalar_lea.vmem %s0, 8
    %v18 = vld [vmem:[%s17] sm:$0xff]
    %19 = vrot.lane.b32.xlu0 %v18, 96
    %v20 = vpop.permute.xlu0 %19
    %vm21 = vcmask 261120
    %s22 = scalar_lea.vmem [#allocation0], 33
    %23 = vst.msk [vmem:[%s22] ss:$4 sm:$0xff] %vm21, %v20
    %v24 = vld [vmem:[%s0] sm:$0xff]
    %25 = vrot.lane.b32.xlu0 %v24, 64
    %v26 = vpop.permute.xlu0 %25
    %vm27 = vcmask 261120
    %s28 = scalar_lea.vmem [#allocation0], 2
    %29 = vst.msk [vmem:[%s28] ss:$4 sm:$0xff] %vm27, %v26
    %s30 = scalar_lea.vmem %s0, 8
    %v31 = vld [vmem:[%s30] sm:$0xff]
    %32 = vrot.lane.b32.xlu0 %v31, 64
    %v33 = vpop.permute.xlu0 %32
    %vm34 = vcmask 261120
    %s35 = scalar_lea.vmem [#allocation0], 34
    %36 = vst.msk [vmem:[%s35] ss:$4 sm:$0xff] %vm34, %v33
    %v37 = vld [vmem:[%s0] sm:$0xff]
    %38 = vrot.lane.b32.xlu0 %v37, 32
    %v39 = vpop.permute.xlu0 %38
    %vm40 = vcmask 261120
    %s41 = scalar_lea.vmem [#allocation0], 3
    %42 = vst.msk [vmem:[%s41] ss:$4 sm:$0xff] %vm40, %v39
    %s43 = scalar_lea.vmem %s0, 8
    %v44 = vld [vmem:[%s43] sm:$0xff]
    %45 = vrot.lane.b32.xlu0 %v44, 32
    %v46 = vpop.permute.xlu0 %45
    %vm47 = vcmask 261120
    %s48 = scalar_lea.vmem [#allocation0], 35
    %49 = vst.msk [vmem:[%s48] ss:$4 sm:$0xff] %vm47, %v46
    %s51 = ssub.s32 1024, 1024
    %52 = vsyncadd [#allocation1], %s51
    %s54 = sshll.u32 [#allocation0], 4
    %s55 = int_to_ptr.vmem [resolvable:$true] %s54
    %57 = dma.vmem_to_hbm [thread:$0]  %s55, 1024, %s1, [#allocation1]
    %58 = dma.done [#allocation1], 1024
    %59 = vsyncpa [#allocation1], 1

// kernel: extended_mask_rcnn_forward.1
$region0: #{extended_mask_rcnn_forward.1}
  #allocation0 [shape = 'u32[]', space=smem, size = 0x4, offset = 0x4, fixed_abs, tag = 'smem constant byte address 0x4 - core index']
  #allocation1 [shape = 'u32[144,128]{1,0:T(1,128)}', space=vmem, size = 0x12000, scoped, tag = 'internal scratch']
  #allocation2 [shape = 'f32[1,1]{1,0:T(1,128)S(1)}', space=vmem, size = 0x200, scoped, tag = 'scoped memory for extended_mask_rcnn_forward.1']
  %s0 = inlined_call_operand.vmem [shape: bf16[32,2048], index: 0, kind: input, shape index: {}]
  %s1 = inlined_call_operand.vmem [shape: bf16[32,32], index: 1, kind: input, shape index: {}]
  %s2 = inlined_call_operand.vmem [shape: f32[32,1], index: 2, kind: input, shape index: {}]
  %s3 = inlined_call_operand.vmem [shape: bf16[128,32], index: 3, kind: input, shape index: {}]
  %s4 = inlined_call_operand.vmem [shape: f32[128,1], index: 4, kind: input, shape index: {}]
  %s5 = inlined_call_operand.vmem [shape: f32[128,1], index: 5, kind: input, shape index: {}]
  %s6 = inlined_call_operand.<no memory space> [shape: f32[1,1], index: 6, kind: input, shape index: {}]
  %s7 = inlined_call_operand.vmem [shape: f32[1,2048], index: 7, kind: output, shape index: {}]
  %s8 = sld [smem:[#allocation0]]
  $region84: #{extended_mask_rcnn_forward.1} parent=0
    _
  %s10 = ssub.s32 1, %s8
  %s11 = scalar_select 0, %s10, %s8
  %v12 = vstv %s6
  %13 = vst [vmem:[#allocation2] sm:$0x1] %v12
  $region1: #{extended_mask_rcnn_forward.1} parent=0
    #allocation3 [shape = 'u8[131072]{0}', space=vmem, size = 0x20000, scoped, tag = 'input window, operand 0']
    loop: start=0, step=1, limit=4
    $region2: #{extended_mask_rcnn_forward.1} parent=1 // loop_pre_header
      _
    $region3: #{extended_mask_rcnn_forward.1} parent=1 // loop_header
      %s15 = sphi 0, %s19
      %p16 = scmp.ge.s32.totalorder %s15, 4
      %s25 = sphi 0, %s27
      %s28 = sphi 0, %s25
      %s29 = sphi 0, %s28
      %s45 = sphi 0, %s29
      %s49 = sphi 0, %s49
      %s51 = sphi 0, %s49
      %s52 = sphi 0, %s51
      %s66 = sphi 0, %s52
      %s70 = sphi 0, %s70
      %s72 = sphi 0, %s70
      %s73 = sphi 0, %s72
      %s87 = sphi 0, %s73
      %s91 = sphi 0, %s91
      %s93 = sphi 0, %s91
      %s94 = sphi 0, %s93
      %s108 = sphi 0, %s94
      %s112 = sphi 0, %s112
      %s114 = sphi 0, %s112
      %s115 = sphi 0, %s114
      %s129 = sphi 0, %s115
      %s133 = sphi 0, %s133
      %s135 = sphi 0, %s133
      %s136 = sphi 0, %s135
      %s150 = sphi 0, %s136
      %s154 = sphi 0, %s154
      %s156 = sphi 0, %s154
      %s157 = sphi 0, %s156
      %s171 = sphi 0, %s157
      %s177 = sphi 0, %s179
      %s180 = sphi 0, %s177
      %s181 = sphi 0, %s180
      %s197 = sphi 0, %s181
    $region4: #{extended_mask_rcnn_forward.1} parent=1 // loop_header_branch
      %18 = sbr.rel (%p16) target = $region8
    $region5: #{extended_mask_rcnn_forward.1} parent=1 // loop_body
      %s20 = ssub.s32 %s15, 1
      %s21 = ssub.s32 %s15, 2
      %s22 = sadd.s32 %s15, 1
      %s23 = ssub.s32 %s15, %s22
      %p24 = scmp.eq.s32.totalorder %s23, 0
      %s26 = sadd.s32 %s25, 1
      %s27 = scalar_select %p24, %s25, %s26
      %p30 = pneg %p24
      %p31 = scmp.eq.s32.totalorder %s15, 1
      %p32 = por %p30, %p31
      %p33 = scmp.ne.s32.totalorder %s25, %s28
      %p34 = scmp.eq.s32.totalorder %s15, 0
      %p35 = por %p33, %p34
      %p36 = scmp.ne.s32.totalorder %s25, %s28
      %p37 = scmp.eq.s32.totalorder %s20, 1
      %p38 = por %p36, %p37
      %p39 = scmp.ne.s32.totalorder %s28, %s29
      %p40 = scmp.eq.s32.totalorder %s20, 0
      %p41 = por %p39, %p40
      %p42 = scmp.ne.s32.totalorder %s28, %s29
      %p43 = scmp.eq.s32.totalorder %s21, 1
      %p44 = por %p42, %p43
      %p46 = scmp.ne.s32.totalorder %s29, %s45
      %p47 = scmp.eq.s32.totalorder %s21, 0
      %p48 = por %p46, %p47
      %s50 = sadd.s32 %s49, 1
      %p53 = scmp.eq.s32.totalorder %s15, 1
      %p54 = scmp.ne.s32.totalorder %s49, %s51
      %p55 = scmp.eq.s32.totalorder %s15, 0
      %p56 = por %p54, %p55
      %p57 = scmp.ne.s32.totalorder %s49, %s51
      %p58 = scmp.eq.s32.totalorder %s20, 1
      %p59 = por %p57, %p58
      %p60 = scmp.ne.s32.totalorder %s51, %s52
      %p61 = scmp.eq.s32.totalorder %s20, 0
      %p62 = por %p60, %p61
      %p63 = scmp.ne.s32.totalorder %s51, %s52
      %p64 = scmp.eq.s32.totalorder %s21, 1
      %p65 = por %p63, %p64
      %p67 = scmp.ne.s32.totalorder %s52, %s66
      %p68 = scmp.eq.s32.totalorder %s21, 0
      %p69 = por %p67, %p68
      %s71 = sadd.s32 %s70, 1
      %p74 = scmp.eq.s32.totalorder %s15, 1
      %p75 = scmp.ne.s32.totalorder %s70, %s72
      %p76 = scmp.eq.s32.totalorder %s15, 0
      %p77 = por %p75, %p76
      %p78 = scmp.ne.s32.totalorder %s70, %s72
      %p79 = scmp.eq.s32.totalorder %s20, 1
      %p80 = por %p78, %p79
      %p81 = scmp.ne.s32.totalorder %s72, %s73
      %p82 = scmp.eq.s32.totalorder %s20, 0
      %p83 = por %p81, %p82
      %p84 = scmp.ne.s32.totalorder %s72, %s73
      %p85 = scmp.eq.s32.totalorder %s21, 1
      %p86 = por %p84, %p85
      %p88 = scmp.ne.s32.totalorder %s73, %s87
      %p89 = scmp.eq.s32.totalorder %s21, 0
      %p90 = por %p88, %p89
      %s92 = sadd.s32 %s91, 1
      %p95 = scmp.eq.s32.totalorder %s15, 1
      %p96 = scmp.ne.s32.totalorder %s91, %s93
      %p97 = scmp.eq.s32.totalorder %s15, 0
      %p98 = por %p96, %p97
      %p99 = scmp.ne.s32.totalorder %s91, %s93
      %p100 = scmp.eq.s32.totalorder %s20, 1
      %p101 = por %p99, %p100
      %p102 = scmp.ne.s32.totalorder %s93, %s94
      %p103 = scmp.eq.s32.totalorder %s20, 0
      %p104 = por %p102, %p103
      %p105 = scmp.ne.s32.totalorder %s93, %s94
      %p106 = scmp.eq.s32.totalorder %s21, 1
      %p107 = por %p105, %p106
      %p109 = scmp.ne.s32.totalorder %s94, %s108
      %p110 = scmp.eq.s32.totalorder %s21, 0
      %p111 = por %p109, %p110
      %s113 = sadd.s32 %s112, 1
      %p116 = scmp.eq.s32.totalorder %s15, 1
      %p117 = scmp.ne.s32.totalorder %s112, %s114
      %p118 = scmp.eq.s32.totalorder %s15, 0
      %p119 = por %p117, %p118
      %p120 = scmp.ne.s32.totalorder %s112, %s114
      %p121 = scmp.eq.s32.totalorder %s20, 1
      %p122 = por %p120, %p121
      %p123 = scmp.ne.s32.totalorder %s114, %s115
      %p124 = scmp.eq.s32.totalorder %s20, 0
      %p125 = por %p123, %p124
      %p126 = scmp.ne.s32.totalorder %s114, %s115
      %p127 = scmp.eq.s32.totalorder %s21, 1
      %p128 = por %p126, %p127
      %p130 = scmp.ne.s32.totalorder %s115, %s129
      %p131 = scmp.eq.s32.totalorder %s21, 0
      %p132 = por %p130, %p131
      %s134 = sadd.s32 %s133, 1
      %p137 = scmp.eq.s32.totalorder %s15, 1
      %p138 = scmp.ne.s32.totalorder %s133, %s135
      %p139 = scmp.eq.s32.totalorder %s15, 0
      %p140 = por %p138, %p139
      %p141 = scmp.ne.s32.totalorder %s133, %s135
      %p142 = scmp.eq.s32.totalorder %s20, 1
      %p143 = por %p141, %p142
      %p144 = scmp.ne.s32.totalorder %s135, %s136
      %p145 = scmp.eq.s32.totalorder %s20, 0
      %p146 = por %p144, %p145
      %p147 = scmp.ne.s32.totalorder %s135, %s136
      %p148 = scmp.eq.s32.totalorder %s21, 1
      %p149 = por %p147, %p148
      %p151 = scmp.ne.s32.totalorder %s136, %s150
      %p152 = scmp.eq.s32.totalorder %s21, 0
      %p153 = por %p151, %p152
      %s155 = sadd.s32 %s154, 1
      %p158 = scmp.eq.s32.totalorder %s15, 1
      %p159 = scmp.ne.s32.totalorder %s154, %s156
      %p160 = scmp.eq.s32.totalorder %s15, 0
      %p161 = por %p159, %p160
      %p162 = scmp.ne.s32.totalorder %s154, %s156
      %p163 = scmp.eq.s32.totalorder %s20, 1
      %p164 = por %p162, %p163
      %p165 = scmp.ne.s32.totalorder %s156, %s157
      %p166 = scmp.eq.s32.totalorder %s20, 0
      %p167 = por %p165, %p166
      %p168 = scmp.ne.s32.totalorder %s156, %s157
      %p169 = scmp.eq.s32.totalorder %s21, 1
      %p170 = por %p168, %p169
      %p172 = scmp.ne.s32.totalorder %s157, %s171
      %p173 = scmp.eq.s32.totalorder %s21, 0
      %p174 = por %p172, %p173
      %s175 = ssub.s32 %s15, %s22
      %p176 = scmp.eq.s32.totalorder %s175, 0
      %s178 = sadd.s32 %s177, 1
      %s179 = scalar_select %p176, %s177, %s178
      %p182 = pneg %p176
      %p183 = scmp.eq.s32.totalorder %s15, 1
      %p184 = por %p182, %p183
      %p185 = scmp.ne.s32.totalorder %s177, %s180
      %p186 = scmp.eq.s32.totalorder %s15, 0
      %p187 = por %p185, %p186
      %p188 = scmp.ne.s32.totalorder %s177, %s180
      %p189 = scmp.eq.s32.totalorder %s20, 1
      %p190 = por %p188, %p189
      %p191 = scmp.ne.s32.totalorder %s180, %s181
      %p192 = scmp.eq.s32.totalorder %s20, 0
      %p193 = por %p191, %p192
      %p194 = scmp.ne.s32.totalorder %s180, %s181
      %p195 = scmp.eq.s32.totalorder %s21, 1
      %p196 = por %p194, %p195
      %p198 = scmp.ne.s32.totalorder %s181, %s197
      %p199 = scmp.eq.s32.totalorder %s21, 0
      %p200 = por %p198, %p199
      %p201 = scmp.le.s32.totalorder 1, %s15
      %p202 = scmp.lt.s32.totalorder %s15, 3
      %p203 = pnand %p201, %p202
      %p204 = pneg %p203
      // Predicated region
      $region9: #{extended_mask_rcnn_forward.1} parent=5 // pred_check
        _
      $region10: #{extended_mask_rcnn_forward.1} parent=5 // pred_check_branch
        %206 = sbr.rel (%p203) target = $region12
      $region11: #{extended_mask_rcnn_forward.1} parent=5 // pred_region
        %s207 = ssub.s32 %s15, 1
        // Predicated region
        $region13: #{extended_mask_rcnn_forward.1} parent=11 // pred_check
          %p208 = pneg %p62
        $region14: #{extended_mask_rcnn_forward.1} parent=11 // pred_check_branch
          %210 = sbr.rel (%p208) target = $region16
        $region15: #{extended_mask_rcnn_forward.1} parent=11 // pred_region
          _
        $region16: #{extended_mask_rcnn_forward.1} parent=11 // pred_fallthru
          _
        // Predicated region
        $region17: #{extended_mask_rcnn_forward.1} parent=11 // pred_check
          %p211 = pneg %p83
        $region18: #{extended_mask_rcnn_forward.1} parent=11 // pred_check_branch
          %213 = sbr.rel (%p211) target = $region20
        $region19: #{extended_mask_rcnn_forward.1} parent=11 // pred_region
          _
        $region20: #{extended_mask_rcnn_forward.1} parent=11 // pred_fallthru
          _
        // Predicated region
        $region21: #{extended_mask_rcnn_forward.1} parent=11 // pred_check
          %p214 = pneg %p104
        $region22: #{extended_mask_rcnn_forward.1} parent=11 // pred_check_branch
          %216 = sbr.rel (%p214) target = $region24
        $region23: #{extended_mask_rcnn_forward.1} parent=11 // pred_region
          _
        $region24: #{extended_mask_rcnn_forward.1} parent=11 // pred_fallthru
          _
        // Predicated region
        $region25: #{extended_mask_rcnn_forward.1} parent=11 // pred_check
          %p217 = pneg %p125
        $region26: #{extended_mask_rcnn_forward.1} parent=11 // pred_check_branch
          %219 = sbr.rel (%p217) target = $region28
        $region27: #{extended_mask_rcnn_forward.1} parent=11 // pred_region
          _
        $region28: #{extended_mask_rcnn_forward.1} parent=11 // pred_fallthru
          _
        // Predicated region
        $region29: #{extended_mask_rcnn_forward.1} parent=11 // pred_check
          %p220 = pneg %p146
        $region30: #{extended_mask_rcnn_forward.1} parent=11 // pred_check_branch
          %222 = sbr.rel (%p220) target = $region32
        $region31: #{extended_mask_rcnn_forward.1} parent=11 // pred_region
          _
        $region32: #{extended_mask_rcnn_forward.1} parent=11 // pred_fallthru
          _
        // Predicated region
        $region33: #{extended_mask_rcnn_forward.1} parent=11 // pred_check
          %p223 = pneg %p167
        $region34: #{extended_mask_rcnn_forward.1} parent=11 // pred_check_branch
          %225 = sbr.rel (%p223) target = $region36
        $region35: #{extended_mask_rcnn_forward.1} parent=11 // pred_region
          _
        $region36: #{extended_mask_rcnn_forward.1} parent=11 // pred_fallthru
          _
      $region12: #{extended_mask_rcnn_forward.1} parent=5 // pred_fallthru
        _
      %p226 = scmp.lt.s32.totalorder %s15, 2
      // Predicated region
      $region37: #{extended_mask_rcnn_forward.1} parent=5 // pred_check
        %p227 = pneg %p226
      $region38: #{extended_mask_rcnn_forward.1} parent=5 // pred_check_branch
        %229 = sbr.rel (%p227) target = $region40
      $region39: #{extended_mask_rcnn_forward.1} parent=5 // pred_region
        // Predicated region
        $region41: #{extended_mask_rcnn_forward.1} parent=39 // pred_check
          %p230 = pneg %p35
        $region42: #{extended_mask_rcnn_forward.1} parent=39 // pred_check_branch
          %232 = sbr.rel (%p230) target = $region44
        $region43: #{extended_mask_rcnn_forward.1} parent=39 // pred_region
          %s233 = sand.u32 %s25, 1
          %s234 = sand.u32 %s25, 1
          %s235 = smul.addr %s234, 128
          %s236 = scalar_lea.vmem [#allocation3], %s235
          %s237 = smul.u32 8, %s15
          %s238 = smul.addr %s237, 4
          %s239 = scalar_lea.vmem %s0, %s238
          // Predicated region
          $region45: #{extended_mask_rcnn_forward.1} parent=43 // pred_check
            _
          $region46: #{extended_mask_rcnn_forward.1} parent=43 // pred_check_branch
            %241 = sbr.rel (0) target = $region48
          $region47: #{extended_mask_rcnn_forward.1} parent=43 // pred_region
            // Predicated region
            $region49: #{extended_mask_rcnn_forward.1} parent=47 // pred_check
              _
            $region50: #{extended_mask_rcnn_forward.1} parent=47 // pred_check_branch
              %243 = sbr.rel (0) target = $region52
            $region51: #{extended_mask_rcnn_forward.1} parent=47 // pred_region
              loop: start=0, step=1, limit=1
              $region53: #{extended_mask_rcnn_forward.1} parent=51 // loop_pre_header
                _
              $region54: #{extended_mask_rcnn_forward.1} parent=51 // loop_header
                %s245 = sphi 0, %s249
                %p246 = scmp.ge.s32.totalorder %s245, 1
                %s250 = sphi %s239, %s239
                %s251 = sphi %s236, %s236
              $region55: #{extended_mask_rcnn_forward.1} parent=51 // loop_header_branch
                %248 = sbr.rel (%p246) target = $region59
              $region56: #{extended_mask_rcnn_forward.1} parent=51 // loop_body
                %v252 = vld [vmem:[%s250] sm:$0xff]
                %253 = vst [vmem:[%s251] sm:$0xff] %v252
                %v254 = vld [vmem:[%s250 + $0x8] sm:$0xff]
                %255 = vst [vmem:[%s251 + $0x8] sm:$0xff] %v254
                %v256 = vld [vmem:[%s250 + $0x10] sm:$0xff]
                %257 = vst [vmem:[%s251 + $0x10] sm:$0xff] %v256
                %v258 = vld [vmem:[%s250 + $0x18] sm:$0xff]
                %259 = vst [vmem:[%s251 + $0x18] sm:$0xff] %v258
                %v260 = vld [vmem:[%s250 + $0x40] sm:$0xff]
                %261 = vst [vmem:[%s251 + $0x20] sm:$0xff] %v260
                %v262 = vld [vmem:[%s250 + $0x48] sm:$0xff]
                %263 = vst [vmem:[%s251 + $0x28] sm:$0xff] %v262
                %v264 = vld [vmem:[%s250 + $0x50] sm:$0xff]
                %265 = vst [vmem:[%s251 + $0x30] sm:$0xff] %v264
                %v266 = vld [vmem:[%s250 + $0x58] sm:$0xff]
                %267 = vst [vmem:[%s251 + $0x38] sm:$0xff] %v266
                %v268 = vld [vmem:[%s250 + $0x80] sm:$0xff]
                %269 = vst [vmem:[%s251 + $0x40] sm:$0xff] %v268
                %v270 = vld [vmem:[%s250 + $0x88] sm:$0xff]
                %271 = vst [vmem:[%s251 + $0x48] sm:$0xff] %v270
                %v272 = vld [vmem:[%s250 + $0x90] sm:$0xff]
                %273 = vst [vmem:[%s251 + $0x50] sm:$0xff] %v272
                %v274 = vld [vmem:[%s250 + $0x98] sm:$0xff]
                %275 = vst [vmem:[%s251 + $0x58] sm:$0xff] %v274
                %v276 = vld [vmem:[%s250 + $0xc0] sm:$0xff]
                %277 = vst [vmem:[%s251 + $0x60] sm:$0xff] %v276
                %v278 = vld [vmem:[%s250 + $0xc8] sm:$0xff]
                %279 = vst [vmem:[%s251 + $0x68] sm:$0xff] %v278
                %v280 = vld [vmem:[%s250 + $0xd0] sm:$0xff]
                %281 = vst [vmem:[%s251 + $0x70] sm:$0xff] %v280
                %v282 = vld [vmem:[%s250 + $0xd8] sm:$0xff]
                %283 = vst [vmem:[%s251 + $0x78] sm:$0xff] %v282
              $region57: #{extended_mask_rcnn_forward.1} parent=51 // loop_footer
                %s249 = sadd.s32 1, %s245
              $region58: #{extended_mask_rcnn_forward.1} parent=51 // loop_footer_branch
                %244 = sbr.rel target = $region54
              $region59: #{extended_mask_rcnn_forward.1} parent=51 // loop_exit
                _
            $region52: #{extended_mask_rcnn_forward.1} parent=47 // pred_fallthru
              _
            // Predicated region
            $region60: #{extended_mask_rcnn_forward.1} parent=47 // pred_check
              _
            $region61: #{extended_mask_rcnn_forward.1} parent=47 // pred_check_branch
              %285 = sbr.rel target = $region63
            $region62: #{extended_mask_rcnn_forward.1} parent=47 // pred_region
              _
            $region63: #{extended_mask_rcnn_forward.1} parent=47 // pred_fallthru
              _
          $region48: #{extended_mask_rcnn_forward.1} parent=43 // pred_fallthru
            _
          %286 = vnop
        $region44: #{extended_mask_rcnn_forward.1} parent=39 // pred_fallthru
          _
      $region40: #{extended_mask_rcnn_forward.1} parent=5 // pred_fallthru
        _
      %p287 = scmp.le.s32.totalorder 1, %s15
      %p288 = scmp.lt.s32.totalorder %s15, 3
      %p289 = pnand %p287, %p288
      %p290 = pneg %p289
      // Predicated region
      $region64: #{extended_mask_rcnn_forward.1} parent=5 // pred_check
        _
      $region65: #{extended_mask_rcnn_forward.1} parent=5 // pred_check_branch
        %292 = sbr.rel (%p289) target = $region67
      $region66: #{extended_mask_rcnn_forward.1} parent=5 // pred_region
        %s293 = ssub.s32 %s15, 1
        %s294 = sand.u32 %s28, 1
        %s295 = sand.u32 %s28, 1
        %s296 = smul.addr %s295, 128
        %s297 = scalar_lea.vmem [#allocation3], %s296
        // Predicated region
        $region68: #{extended_mask_rcnn_forward.1} parent=66 // pred_check
          %p298 = pneg %p41
        $region69: #{extended_mask_rcnn_forward.1} parent=66 // pred_check_branch
          %300 = sbr.rel (%p298) target = $region71
        $region70: #{extended_mask_rcnn_forward.1} parent=66 // pred_region
          _
        $region71: #{extended_mask_rcnn_forward.1} parent=66 // pred_fallthru
          _
        %s301 = sand.u32 %s28, 1
        %s302 = sand.u32 %s28, 1
        %s303 = smul.addr %s302, 128
        %s304 = scalar_lea.vmem [#allocation3], %s303
        %p305 = pneg %p41
        %p306 = pneg %p38
        %p307 = pneg %p62
        %p308 = pneg %p59
        %p309 = pneg %p83
        %p310 = pneg %p80
        %p311 = pneg %p104
        %p312 = pneg %p101
        %p313 = pneg %p125
        %p314 = pneg %p122
        %p315 = pneg %p146
        %p316 = pneg %p143
        %p317 = pneg %p167
        %p318 = pneg %p164
        %p319 = pneg %p193
        %p320 = pneg %p190
        %s321 = smul.u32 8, %s20
        %p322 = scmp.lt.s32.totalorder %s321, 15
        %s323 = scalar_select %p322, %s321, 15
        %s324 = scalar_lea.vmem %s7, %s323
        %s325 = smul.u32 8, %s20
        %s326 = smul.u32 8, %s20
        %p327 = scmp.lt.s32.totalorder %s326, 15
        %s328 = scalar_select %p327, %s326, 15
        %s329 = scalar_lea.vmem %s7, %s328
        %s330 = smul.u32 8, %s20
        %v332 = vld [vmem:[%s1] sm:$0xf]
        %v333 = vld [vmem:[%s1 + $0x4] sm:$0xf]
        %v334 = vld [vmem:[%s1 + $0x8] sm:$0xf]
        %v335 = vld [vmem:[%s1 + $0xc] sm:$0xf]
        %v336 = vld [vmem:[%s297] sm:$0xff]
        %v337 = vld [vmem:[%s297 + $0x8] sm:$0xff]
        %v338 = vld [vmem:[%s297 + $0x10] sm:$0xff]
        %v339 = vld [vmem:[%s297 + $0x18] sm:$0xff]
        %v340 = vld [vmem:[%s297 + $0x20] sm:$0xff]
        %v341 = vld [vmem:[%s297 + $0x28] sm:$0xff]
        %v342 = vld [vmem:[%s297 + $0x30] sm:$0xff]
        %v343 = vld [vmem:[%s297 + $0x38] sm:$0xff]
        %v344 = vld [vmem:[%s297 + $0x40] sm:$0xff]
        %v345 = vld [vmem:[%s297 + $0x48] sm:$0xff]
        %v346 = vld [vmem:[%s297 + $0x50] sm:$0xff]
        %v347 = vld [vmem:[%s297 + $0x58] sm:$0xff]
        %v348 = vld [vmem:[%s297 + $0x60] sm:$0xff]
        %v349 = vld [vmem:[%s297 + $0x68] sm:$0xff]
        %v350 = vld [vmem:[%s297 + $0x70] sm:$0xff]
        %v351 = vld [vmem:[%s297 + $0x78] sm:$0xff]
        %v352 = vld [vmem:[%s2] sm:$0xff]
        %v353 = vld [vmem:[%s2 + $0x8] sm:$0xff]
        %v354 = vld [vmem:[%s2 + $0x10] sm:$0xff]
        %v355 = vld [vmem:[%s2 + $0x18] sm:$0xff]
        %357 = vset.pattern.permute.xlu0 0
        %358 = vperm.xlu0 %357, %v352
        %v359 = vpop.permute.xlu0 %358
        %362 = vset.pattern.permute.xlu0 0
        %363 = vperm.xlu0 %362, %v353
        %v364 = vpop.permute.xlu0 %363
        %367 = vset.pattern.permute.xlu0 0
        %368 = vperm.xlu0 %367, %v354
        %v369 = vpop.permute.xlu0 %368
        %372 = vset.pattern.permute.xlu0 0
        %373 = vperm.xlu0 %372, %v355
        %v374 = vpop.permute.xlu0 %373
        %v380 = vunpack.c.l.b16 %v332
        %v381 = vunpack.c.l.b16 %v333
        %v382 = vunpack.c.l.b16 %v334
        %v383 = vunpack.c.l.b16 %v335
        %v384 = vpack.c.b16 %v381, %v380
        %v385 = vpack.c.b16 %v383, %v382
        %v402 = vunpack.c.l.b16 %v336
        %v403 = vunpack.c.h.b16 %v336
        %v404 = vunpack.c.l.b16 %v337
        %v405 = vunpack.c.h.b16 %v337
        %v406 = vunpack.c.l.b16 %v338
        %v407 = vunpack.c.h.b16 %v338
        %v408 = vunpack.c.l.b16 %v339
        %v409 = vunpack.c.h.b16 %v339
        %v410 = vunpack.c.l.b16 %v340
        %v411 = vunpack.c.h.b16 %v340
        %v412 = vunpack.c.l.b16 %v341
        %v413 = vunpack.c.h.b16 %v341
        %v414 = vunpack.c.l.b16 %v342
        %v415 = vunpack.c.h.b16 %v342
        %v416 = vunpack.c.l.b16 %v343
        %v417 = vunpack.c.h.b16 %v343
        %v418 = vunpack.c.l.b16 %v344
        %v419 = vunpack.c.h.b16 %v344
        %v420 = vunpack.c.l.b16 %v345
        %v421 = vunpack.c.h.b16 %v345
        %v422 = vunpack.c.l.b16 %v346
        %v423 = vunpack.c.h.b16 %v346
        %v424 = vunpack.c.l.b16 %v347
        %v425 = vunpack.c.h.b16 %v347
        %v426 = vunpack.c.l.b16 %v348
        %v427 = vunpack.c.h.b16 %v348
        %v428 = vunpack.c.l.b16 %v349
        %v429 = vunpack.c.h.b16 %v349
        %v430 = vunpack.c.l.b16 %v350
        %v431 = vunpack.c.h.b16 %v350
        %v432 = vunpack.c.l.b16 %v351
        %v433 = vunpack.c.h.b16 %v351
        %v434 = vpack.c.b16 %v410, %v402
        %v435 = vpack.c.b16 %v411, %v403
        %v436 = vpack.c.b16 %v412, %v404
        %v437 = vpack.c.b16 %v413, %v405
        %v438 = vpack.c.b16 %v414, %v406
        %v439 = vpack.c.b16 %v415, %v407
        %v440 = vpack.c.b16 %v416, %v408
        %v441 = vpack.c.b16 %v417, %v409
        %v442 = vpack.c.b16 %v426, %v418
        %v443 = vpack.c.b16 %v427, %v419
        %v444 = vpack.c.b16 %v428, %v420
        %v445 = vpack.c.b16 %v429, %v421
        %v446 = vpack.c.b16 %v430, %v422
        %v447 = vpack.c.b16 %v431, %v423
        %v448 = vpack.c.b16 %v432, %v424
        %v449 = vpack.c.b16 %v433, %v425
        %vm466 = vcmask 261120
        %v468 = vsel %vm466, %v384, 0
        %v471 = vsel %vm466, %v385, 0
        %473 = vmatprep.subr.bf16.mxu0 %v435
        %474 = vmatpush1.bf16.msra.mxu0 %v434
        %475 = vmatprep.subr.bf16.mxu0 %v443
        %476 = vmatpush1.bf16.msra.mxu0 %v442
        %477 = vmatprep.subr.bf16.mxu0 0
        %478 = vmatpush1.bf16.msra.mxu0 0
        %479 = vmatprep.subr.bf16.mxu0 0
        %480 = vmatpush1.bf16.msra.mxu0 0
        %481 = vmatprep.subr.bf16.mxu0 0
        %482 = vmatpush1.bf16.msra.mxu0 0
        %483 = vmatprep.subr.bf16.mxu0 0
        %484 = vmatpush1.bf16.msra.mxu0 0
        %485 = vmatprep.subr.bf16.mxu0 0
        %486 = vmatpush1.bf16.msra.mxu0 0
        %487 = vmatprep.subr.bf16.mxu0 0
        %488 = vmatpush1.bf16.msra.mxu0 0
        %489 = vmatprep.subr.bf16.mxu0 0
        %490 = vmatpush1.bf16.msra.mxu0 0
        %491 = vmatprep.subr.bf16.mxu0 0
        %492 = vmatpush1.bf16.msra.mxu0 0
        %493 = vmatprep.subr.bf16.mxu0 0
        %494 = vmatpush1.bf16.msra.mxu0 0
        %495 = vmatprep.subr.bf16.mxu0 0
        %496 = vmatpush1.bf16.msra.mxu0 0
        %497 = vmatprep.subr.bf16.mxu0 0
        %498 = vmatpush1.bf16.msra.mxu0 0
        %499 = vmatprep.subr.bf16.mxu0 0
        %500 = vmatpush1.bf16.msra.mxu0 0
        %501 = vmatprep.subr.bf16.mxu0 0
        %502 = vmatpush1.bf16.msra.mxu0 0
        %503 = vmatprep.subr.bf16.mxu0 0
        %504 = vmatpush1.bf16.msra.mxu0 0
        %505 = vmatprep.mubr.bf16.mxu0 0
        %506 = vmatmul.mubr.bf16.gmra.mrb[0].mxu0 %v468
        %v507 = vpop.f32.mrb[0].mxu0
        %v508 = vadd.f32 %v359, %v507
        %v509 = vpop.f32.mrb[0].mxu0
        %v510 = vadd.f32 %v359, %v509
        %v511 = vpop.f32.mrb[0].mxu0
        %v512 = vadd.f32 %v364, %v511
        %v513 = vpop.f32.mrb[0].mxu0
        %v514 = vadd.f32 %v364, %v513
        %515 = vmatprep.mubr.bf16.mxu0 0
        %516 = vmatmul.mubr.bf16.gmra.mrb[0].mxu0 %v471
        %v517 = vpop.f32.mrb[0].mxu0
        %v518 = vadd.f32 %v369, %v517
        %v519 = vpop.f32.mrb[0].mxu0
        %v520 = vadd.f32 %v369, %v519
        %v521 = vpop.f32.mrb[0].mxu0
        %v522 = vadd.f32 %v374, %v521
        %v523 = vpop.f32.mrb[0].mxu0
        %v524 = vadd.f32 %v374, %v523
        %525 = vdwg.mxu0
        %526 = vmatprep.subr.bf16.mxu0 %v437
        %527 = vmatpush1.bf16.msra.mxu0 %v436
        %528 = vmatprep.subr.bf16.mxu0 %v445
        %529 = vmatpush1.bf16.msra.mxu0 %v444
        %530 = vmatprep.subr.bf16.mxu0 0
        %531 = vmatpush1.bf16.msra.mxu0 0
        %532 = vmatprep.subr.bf16.mxu0 0
        %533 = vmatpush1.bf16.msra.mxu0 0
        %534 = vmatprep.subr.bf16.mxu0 0
        %535 = vmatpush1.bf16.msra.mxu0 0
        %536 = vmatprep.subr.bf16.mxu0 0
        %537 = vmatpush1.bf16.msra.mxu0 0
        %538 = vmatprep.subr.bf16.mxu0 0
        %539 = vmatpush1.bf16.msra.mxu0 0
        %540 = vmatprep.subr.bf16.mxu0 0
        %541 = vmatpush1.bf16.msra.mxu0 0
        %542 = vmatprep.subr.bf16.mxu0 0
        %543 = vmatpush1.bf16.msra.mxu0 0
        %544 = vmatprep.subr.bf16.mxu0 0
        %545 = vmatpush1.bf16.msra.mxu0 0
        %546 = vmatprep.subr.bf16.mxu0 0
        %547 = vmatpush1.bf16.msra.mxu0 0
        %548 = vmatprep.subr.bf16.mxu0 0
        %549 = vmatpush1.bf16.msra.mxu0 0
        %550 = vmatprep.subr.bf16.mxu0 0
        %551 = vmatpush1.bf16.msra.mxu0 0
        %552 = vmatprep.subr.bf16.mxu0 0
        %553 = vmatpush1.bf16.msra.mxu0 0
        %554 = vmatprep.subr.bf16.mxu0 0
        %555 = vmatpush1.bf16.msra.mxu0 0
        %556 = vmatprep.subr.bf16.mxu0 0
        %557 = vmatpush1.bf16.msra.mxu0 0
        %558 = vmatprep.mubr.bf16.mxu0 0
        %559 = vmatmul.mubr.bf16.gmra.mrb[0].mxu0 %v468
        %v560 = vpop.f32.mrb[0].mxu0
        %v561 = vadd.f32 %v359, %v560
        %v562 = vpop.f32.mrb[0].mxu0
        %v563 = vadd.f32 %v359, %v562
        %v564 = vpop.f32.mrb[0].mxu0
        %v565 = vadd.f32 %v364, %v564
        %v566 = vpop.f32.mrb[0].mxu0
        %v567 = vadd.f32 %v364, %v566
        %568 = vmatprep.mubr.bf16.mxu0 0
        %569 = vmatmul.mubr.bf16.gmra.mrb[0].mxu0 %v471
        %v570 = vpop.f32.mrb[0].mxu0
        %v571 = vadd.f32 %v369, %v570
        %v572 = vpop.f32.mrb[0].mxu0
        %v573 = vadd.f32 %v369, %v572
        %v574 = vpop.f32.mrb[0].mxu0
        %v575 = vadd.f32 %v374, %v574
        %v576 = vpop.f32.mrb[0].mxu0
        %v577 = vadd.f32 %v374, %v576
        %578 = vdwg.mxu0
        %579 = vmatprep.subr.bf16.mxu0 %v439
        %580 = vmatpush1.bf16.msra.mxu0 %v438
        %581 = vmatprep.subr.bf16.mxu0 %v447
        %582 = vmatpush1.bf16.msra.mxu0 %v446
        %583 = vmatprep.subr.bf16.mxu0 0
        %584 = vmatpush1.bf16.msra.mxu0 0
        %585 = vmatprep.subr.bf16.mxu0 0
        %586 = vmatpush1.bf16.msra.mxu0 0
        %587 = vmatprep.subr.bf16.mxu0 0
        %588 = vmatpush1.bf16.msra.mxu0 0
        %589 = vmatprep.subr.bf16.mxu0 0
        %590 = vmatpush1.bf16.msra.mxu0 0
        %591 = vmatprep.subr.bf16.mxu0 0
        %592 = vmatpush1.bf16.msra.mxu0 0
        %593 = vmatprep.subr.bf16.mxu0 0
        %594 = vmatpush1.bf16.msra.mxu0 0
        %595 = vmatprep.subr.bf16.mxu0 0
        %596 = vmatpush1.bf16.msra.mxu0 0
        %597 = vmatprep.subr.bf16.mxu0 0
        %598 = vmatpush1.bf16.msra.mxu0 0
        %599 = vmatprep.subr.bf16.mxu0 0
        %600 = vmatpush1.bf16.msra.mxu0 0
        %601 = vmatprep.subr.bf16.mxu0 0
        %602 = vmatpush1.bf16.msra.mxu0 0
        %603 = vmatprep.subr.bf16.mxu0 0
        %604 = vmatpush1.bf16.msra.mxu0 0
        %605 = vmatprep.subr.bf16.mxu0 0
        %606 = vmatpush1.bf16.msra.mxu0 0
        %607 = vmatprep.subr.bf16.mxu0 0
        %608 = vmatpush1.bf16.msra.mxu0 0
        %609 = vmatprep.subr.bf16.mxu0 0
        %610 = vmatpush1.bf16.msra.mxu0 0
        %611 = vmatprep.mubr.bf16.mxu0 0
        %612 = vmatmul.mubr.bf16.gmra.mrb[0].mxu0 %v468
        %v613 = vpop.f32.mrb[0].mxu0
        %v614 = vadd.f32 %v359, %v613
        %v615 = vpop.f32.mrb[0].mxu0
        %v616 = vadd.f32 %v359, %v615
        %v617 = vpop.f32.mrb[0].mxu0
        %v618 = vadd.f32 %v364, %v617
        %v619 = vpop.f32.mrb[0].mxu0
        %v620 = vadd.f32 %v364, %v619
        %621 = vmatprep.mubr.bf16.mxu0 0
        %622 = vmatmul.mubr.bf16.gmra.mrb[0].mxu0 %v471
        %v623 = vpop.f32.mrb[0].mxu0
        %v624 = vadd.f32 %v369, %v623
        %v625 = vpop.f32.mrb[0].mxu0
        %v626 = vadd.f32 %v369, %v625
        %v627 = vpop.f32.mrb[0].mxu0
        %v628 = vadd.f32 %v374, %v627
        %v629 = vpop.f32.mrb[0].mxu0
        %v630 = vadd.f32 %v374, %v629
        %631 = vdwg.mxu0
        %632 = vmatprep.subr.bf16.mxu0 %v441
        %633 = vmatpush1.bf16.msra.mxu0 %v440
        %634 = vmatprep.subr.bf16.mxu0 %v449
        %635 = vmatpush1.bf16.msra.mxu0 %v448
        %636 = vmatprep.subr.bf16.mxu0 0
        %637 = vmatpush1.bf16.msra.mxu0 0
        %638 = vmatprep.subr.bf16.mxu0 0
        %639 = vmatpush1.bf16.msra.mxu0 0
        %640 = vmatprep.subr.bf16.mxu0 0
        %641 = vmatpush1.bf16.msra.mxu0 0
        %642 = vmatprep.subr.bf16.mxu0 0
        %643 = vmatpush1.bf16.msra.mxu0 0
        %644 = vmatprep.subr.bf16.mxu0 0
        %645 = vmatpush1.bf16.msra.mxu0 0
        %646 = vmatprep.subr.bf16.mxu0 0
        %647 = vmatpush1.bf16.msra.mxu0 0
        %648 = vmatprep.subr.bf16.mxu0 0
        %649 = vmatpush1.bf16.msra.mxu0 0
        %650 = vmatprep.subr.bf16.mxu0 0
        %651 = vmatpush1.bf16.msra.mxu0 0
        %652 = vmatprep.subr.bf16.mxu0 0
        %653 = vmatpush1.bf16.msra.mxu0 0
        %654 = vmatprep.subr.bf16.mxu0 0
        %655 = vmatpush1.bf16.msra.mxu0 0
        %656 = vmatprep.subr.bf16.mxu0 0
        %657 = vmatpush1.bf16.msra.mxu0 0
        %658 = vmatprep.subr.bf16.mxu0 0
        %659 = vmatpush1.bf16.msra.mxu0 0
        %660 = vmatprep.subr.bf16.mxu0 0
        %661 = vmatpush1.bf16.msra.mxu0 0
        %662 = vmatprep.subr.bf16.mxu0 0
        %663 = vmatpush1.bf16.msra.mxu0 0
        %664 = vmatprep.mubr.bf16.mxu0 0
        %665 = vmatmul.mubr.bf16.gmra.mrb[0].mxu0 %v468
        %v666 = vpop.f32.mrb[0].mxu0
        %v667 = vadd.f32 %v359, %v666
        %v668 = vpop.f32.mrb[0].mxu0
        %v669 = vadd.f32 %v359, %v668
        %v670 = vpop.f32.mrb[0].mxu0
        %v671 = vadd.f32 %v364, %v670
        %v672 = vpop.f32.mrb[0].mxu0
        %v673 = vadd.f32 %v364, %v672
        %674 = vmatprep.mubr.bf16.mxu0 0
        %675 = vmatmul.mubr.bf16.gmra.mrb[0].mxu0 %v471
        %v676 = vpop.f32.mrb[0].mxu0
        %v677 = vadd.f32 %v369, %v676
        %v678 = vpop.f32.mrb[0].mxu0
        %v679 = vadd.f32 %v369, %v678
        %v680 = vpop.f32.mrb[0].mxu0
        %v681 = vadd.f32 %v374, %v680
        %v682 = vpop.f32.mrb[0].mxu0
        %v683 = vadd.f32 %v374, %v682
        %684 = vdwg.mxu0
        %v685 = vmax.f32 %v508, 0.0
        %v686 = vmax.f32 %v510, 0.0
        %v687 = vmax.f32 %v561, 0.0
        %v688 = vmax.f32 %v563, 0.0
        %v689 = vmax.f32 %v614, 0.0
        %v690 = vmax.f32 %v616, 0.0
        %v691 = vmax.f32 %v667, 0.0
        %v692 = vmax.f32 %v669, 0.0
        %v693 = vmax.f32 %v512, 0.0
        %v694 = vmax.f32 %v514, 0.0
        %v695 = vmax.f32 %v565, 0.0
        %v696 = vmax.f32 %v567, 0.0
        %v697 = vmax.f32 %v618, 0.0
        %v698 = vmax.f32 %v620, 0.0
        %v699 = vmax.f32 %v671, 0.0
        %v700 = vmax.f32 %v673, 0.0
        %v701 = vmax.f32 %v518, 0.0
        %v702 = vmax.f32 %v520, 0.0
        %v703 = vmax.f32 %v571, 0.0
        %v704 = vmax.f32 %v573, 0.0
        %v705 = vmax.f32 %v624, 0.0
        %v706 = vmax.f32 %v626, 0.0
        %v707 = vmax.f32 %v677, 0.0
        %v708 = vmax.f32 %v679, 0.0
        %v709 = vmax.f32 %v522, 0.0
        %v710 = vmax.f32 %v524, 0.0
        %v711 = vmax.f32 %v575, 0.0
        %v712 = vmax.f32 %v577, 0.0
        %v713 = vmax.f32 %v628, 0.0
        %v714 = vmax.f32 %v630, 0.0
        %v715 = vmax.f32 %v681, 0.0
        %v716 = vmax.f32 %v683, 0.0
        %v717 = vld [vmem:[%s3] sm:$0xf]
        %v718 = vld [vmem:[%s3 + $0x4] sm:$0xf]
        %v719 = vld [vmem:[%s3 + $0x8] sm:$0xf]
        %v720 = vld [vmem:[%s3 + $0xc] sm:$0xf]
        %v721 = vld [vmem:[%s3 + $0x10] sm:$0xf]
        %v722 = vld [vmem:[%s3 + $0x14] sm:$0xf]
        %v723 = vld [vmem:[%s3 + $0x18] sm:$0xf]
        %v724 = vld [vmem:[%s3 + $0x1c] sm:$0xf]
        %v725 = vld [vmem:[%s3 + $0x20] sm:$0xf]
        %v726 = vld [vmem:[%s3 + $0x24] sm:$0xf]
        %v727 = vld [vmem:[%s3 + $0x28] sm:$0xf]
        %v728 = vld [vmem:[%s3 + $0x2c] sm:$0xf]
        %v729 = vld [vmem:[%s3 + $0x30] sm:$0xf]
        %v730 = vld [vmem:[%s3 + $0x34] sm:$0xf]
        %v731 = vld [vmem:[%s3 + $0x38] sm:$0xf]
        %v732 = vld [vmem:[%s3 + $0x3c] sm:$0xf]
        %v733 = vpack.c.bf16 %v693, %v685
        %v734 = vpack.c.bf16 %v694, %v686
        %v735 = vpack.c.bf16 %v695, %v687
        %v736 = vpack.c.bf16 %v696, %v688
        %v737 = vpack.c.bf16 %v697, %v689
        %v738 = vpack.c.bf16 %v698, %v690
        %v739 = vpack.c.bf16 %v699, %v691
        %v740 = vpack.c.bf16 %v700, %v692
        %v741 = vpack.c.bf16 %v709, %v701
        %v742 = vpack.c.bf16 %v710, %v702
        %v743 = vpack.c.bf16 %v711, %v703
        %v744 = vpack.c.bf16 %v712, %v704
        %v745 = vpack.c.bf16 %v713, %v705
        %v746 = vpack.c.bf16 %v714, %v706
        %v747 = vpack.c.bf16 %v715, %v707
        %v748 = vpack.c.bf16 %v716, %v708
        %v749 = vld [vmem:[%s4] sm:$0xff]
        %v750 = vld [vmem:[%s4 + $0x8] sm:$0xff]
        %v751 = vld [vmem:[%s4 + $0x10] sm:$0xff]
        %v752 = vld [vmem:[%s4 + $0x18] sm:$0xff]
        %v753 = vld [vmem:[%s4 + $0x20] sm:$0xff]
        %v754 = vld [vmem:[%s4 + $0x28] sm:$0xff]
        %v755 = vld [vmem:[%s4 + $0x30] sm:$0xff]
        %v756 = vld [vmem:[%s4 + $0x38] sm:$0xff]
        %v757 = vld [vmem:[%s4 + $0x40] sm:$0xff]
        %v758 = vld [vmem:[%s4 + $0x48] sm:$0xff]
        %v759 = vld [vmem:[%s4 + $0x50] sm:$0xff]
        %v760 = vld [vmem:[%s4 + $0x58] sm:$0xff]
        %v761 = vld [vmem:[%s4 + $0x60] sm:$0xff]
        %v762 = vld [vmem:[%s4 + $0x68] sm:$0xff]
        %v763 = vld [vmem:[%s4 + $0x70] sm:$0xff]
        %v764 = vld [vmem:[%s4 + $0x78] sm:$0xff]
        %766 = vset.pattern.permute.xlu0 0
        %767 = vperm.xlu0 %766, %v749
        %v768 = vpop.permute.xlu0 %767
        %771 = vset.pattern.permute.xlu0 0
        %772 = vperm.xlu0 %771, %v750
        %v773 = vpop.permute.xlu0 %772
        %776 = vset.pattern.permute.xlu0 0
        %777 = vperm.xlu0 %776, %v751
        %v778 = vpop.permute.xlu0 %777
        %781 = vset.pattern.permute.xlu0 0
        %782 = vperm.xlu0 %781, %v752
        %v783 = vpop.permute.xlu0 %782
        %786 = vset.pattern.permute.xlu0 0
        %787 = vperm.xlu0 %786, %v753
        %v788 = vpop.permute.xlu0 %787
        %791 = vset.pattern.permute.xlu0 0
        %792 = vperm.xlu0 %791, %v754
        %v793 = vpop.permute.xlu0 %792
        %796 = vset.pattern.permute.xlu0 0
        %797 = vperm.xlu0 %796, %v755
        %v798 = vpop.permute.xlu0 %797
        %801 = vset.pattern.permute.xlu0 0
        %802 = vperm.xlu0 %801, %v756
        %v803 = vpop.permute.xlu0 %802
        %806 = vset.pattern.permute.xlu0 0
        %807 = vperm.xlu0 %806, %v757
        %v808 = vpop.permute.xlu0 %807
        %811 = vset.pattern.permute.xlu0 0
        %812 = vperm.xlu0 %811, %v758
        %v813 = vpop.permute.xlu0 %812
        %816 = vset.pattern.permute.xlu0 0
        %817 = vperm.xlu0 %816, %v759
        %v818 = vpop.permute.xlu0 %817
        %821 = vset.pattern.permute.xlu0 0
        %822 = vperm.xlu0 %821, %v760
        %v823 = vpop.permute.xlu0 %822
        %826 = vset.pattern.permute.xlu0 0
        %827 = vperm.xlu0 %826, %v761
        %v828 = vpop.permute.xlu0 %827
        %831 = vset.pattern.permute.xlu0 0
        %832 = vperm.xlu0 %831, %v762
        %v833 = vpop.permute.xlu0 %832
        %836 = vset.pattern.permute.xlu0 0
        %837 = vperm.xlu0 %836, %v763
        %v838 = vpop.permute.xlu0 %837
        %841 = vset.pattern.permute.xlu0 0
        %842 = vperm.xlu0 %841, %v764
        %v843 = vpop.permute.xlu0 %842
        %v861 = vunpack.c.l.b16 %v717
        %v862 = vunpack.c.l.b16 %v718
        %v863 = vunpack.c.l.b16 %v719
        %v864 = vunpack.c.l.b16 %v720
        %v865 = vunpack.c.l.b16 %v721
        %v866 = vunpack.c.l.b16 %v722
        %v867 = vunpack.c.l.b16 %v723
        %v868 = vunpack.c.l.b16 %v724
        %v869 = vunpack.c.l.b16 %v725
        %v870 = vunpack.c.l.b16 %v726
        %v871 = vunpack.c.l.b16 %v727
        %v872 = vunpack.c.l.b16 %v728
        %v873 = vunpack.c.l.b16 %v729
        %v874 = vunpack.c.l.b16 %v730
        %v875 = vunpack.c.l.b16 %v731
        %v876 = vunpack.c.l.b16 %v732
        %v877 = vpack.c.b16 %v862, %v861
        %v878 = vpack.c.b16 %v864, %v863
        %v879 = vpack.c.b16 %v866, %v865
        %v880 = vpack.c.b16 %v868, %v867
        %v881 = vpack.c.b16 %v870, %v869
        %v882 = vpack.c.b16 %v872, %v871
        %v883 = vpack.c.b16 %v874, %v873
        %v884 = vpack.c.b16 %v876, %v875
        %v886 = vsel %vm466, %v877, 0
        %v889 = vsel %vm466, %v878, 0
        %v892 = vsel %vm466, %v879, 0
        %v895 = vsel %vm466, %v880, 0
        %v898 = vsel %vm466, %v881, 0
        %v901 = vsel %vm466, %v882, 0
        %v904 = vsel %vm466, %v883, 0
        %v907 = vsel %vm466, %v884, 0
        %909 = vmatprep.subr.bf16.mxu0 %v734
        %910 = vmatpush1.bf16.msra.mxu0 %v733
        %911 = vmatprep.subr.bf16.mxu0 %v742
        %912 = vmatpush1.bf16.msra.mxu0 %v741
        %913 = vmatprep.subr.bf16.mxu0 0
        %914 = vmatpush1.bf16.msra.mxu0 0
        %915 = vmatprep.subr.bf16.mxu0 0
        %916 = vmatpush1.bf16.msra.mxu0 0
        %917 = vmatprep.subr.bf16.mxu0 0
        %918 = vmatpush1.bf16.msra.mxu0 0
        %919 = vmatprep.subr.bf16.mxu0 0
        %920 = vmatpush1.bf16.msra.mxu0 0
        %921 = vmatprep.subr.bf16.mxu0 0
        %922 = vmatpush1.bf16.msra.mxu0 0
        %923 = vmatprep.subr.bf16.mxu0 0
        %924 = vmatpush1.bf16.msra.mxu0 0
        %925 = vmatprep.subr.bf16.mxu0 0
        %926 = vmatpush1.bf16.msra.mxu0 0
        %927 = vmatprep.subr.bf16.mxu0 0
        %928 = vmatpush1.bf16.msra.mxu0 0
        %929 = vmatprep.subr.bf16.mxu0 0
        %930 = vmatpush1.bf16.msra.mxu0 0
        %931 = vmatprep.subr.bf16.mxu0 0
        %932 = vmatpush1.bf16.msra.mxu0 0
        %933 = vmatprep.subr.bf16.mxu0 0
        %934 = vmatpush1.bf16.msra.mxu0 0
        %935 = vmatprep.subr.bf16.mxu0 0
        %936 = vmatpush1.bf16.msra.mxu0 0
        %937 = vmatprep.subr.bf16.mxu0 0
        %938 = vmatpush1.bf16.msra.mxu0 0
        %939 = vmatprep.subr.bf16.mxu0 0
        %940 = vmatpush1.bf16.msra.mxu0 0
        %941 = vmatprep.mubr.bf16.mxu0 0
        %942 = vmatmul.mubr.bf16.gmra.mrb[0].mxu0 %v886
        %v943 = vpop.f32.mrb[0].mxu0
        %v944 = vadd.f32 %v768, %v943
        %v945 = vpop.f32.mrb[0].mxu0
        %v946 = vadd.f32 %v768, %v945
        %v947 = vpop.f32.mrb[0].mxu0
        %v948 = vadd.f32 %v773, %v947
        %v949 = vpop.f32.mrb[0].mxu0
        %v950 = vadd.f32 %v773, %v949
        %951 = vmatprep.mubr.bf16.mxu0 0
        %952 = vmatmul.mubr.bf16.gmra.mrb[0].mxu0 %v889
        %v953 = vpop.f32.mrb[0].mxu0
        %v954 = vadd.f32 %v778, %v953
        %v955 = vpop.f32.mrb[0].mxu0
        %v956 = vadd.f32 %v778, %v955
        %v957 = vpop.f32.mrb[0].mxu0
        %v958 = vadd.f32 %v783, %v957
        %v959 = vpop.f32.mrb[0].mxu0
        %v960 = vadd.f32 %v783, %v959
        %961 = vmatprep.mubr.bf16.mxu0 0
        %962 = vmatmul.mubr.bf16.gmra.mrb[0].mxu0 %v892
        %v963 = vpop.f32.mrb[0].mxu0
        %v964 = vadd.f32 %v788, %v963
        %v965 = vpop.f32.mrb[0].mxu0
        %v966 = vadd.f32 %v788, %v965
        %v967 = vpop.f32.mrb[0].mxu0
        %v968 = vadd.f32 %v793, %v967
        %v969 = vpop.f32.mrb[0].mxu0
        %v970 = vadd.f32 %v793, %v969
        %971 = vmatprep.mubr.bf16.mxu0 0
        %972 = vmatmul.mubr.bf16.gmra.mrb[0].mxu0 %v895
        %v973 = vpop.f32.mrb[0].mxu0
        %v974 = vadd.f32 %v798, %v973
        %v975 = vpop.f32.mrb[0].mxu0
        %v976 = vadd.f32 %v798, %v975
        %v977 = vpop.f32.mrb[0].mxu0
        %v978 = vadd.f32 %v803, %v977
        %v979 = vpop.f32.mrb[0].mxu0
        %v980 = vadd.f32 %v803, %v979
        %981 = vmatprep.mubr.bf16.mxu0 0
        %982 = vmatmul.mubr.bf16.gmra.mrb[0].mxu0 %v898
        %v983 = vpop.f32.mrb[0].mxu0
        %v984 = vadd.f32 %v808, %v983
        %v985 = vpop.f32.mrb[0].mxu0
        %v986 = vadd.f32 %v808, %v985
        %v987 = vpop.f32.mrb[0].mxu0
        %v988 = vadd.f32 %v813, %v987
        %v989 = vpop.f32.mrb[0].mxu0
        %v990 = vadd.f32 %v813, %v989
        %991 = vmatprep.mubr.bf16.mxu0 0
        %992 = vmatmul.mubr.bf16.gmra.mrb[0].mxu0 %v901
        %v993 = vpop.f32.mrb[0].mxu0
        %v994 = vadd.f32 %v818, %v993
        %v995 = vpop.f32.mrb[0].mxu0
        %v996 = vadd.f32 %v818, %v995
        %v997 = vpop.f32.mrb[0].mxu0
        %v998 = vadd.f32 %v823, %v997
        %v999 = vpop.f32.mrb[0].mxu0
        %v1000 = vadd.f32 %v823, %v999
        %1001 = vmatprep.mubr.bf16.mxu0 0
        %1002 = vmatmul.mubr.bf16.gmra.mrb[0].mxu0 %v904
        %v1003 = vpop.f32.mrb[0].mxu0
        %v1004 = vadd.f32 %v828, %v1003
        %v1005 = vpop.f32.mrb[0].mxu0
        %v1006 = vadd.f32 %v828, %v1005
        %v1007 = vpop.f32.mrb[0].mxu0
        %v1008 = vadd.f32 %v833, %v1007
        %v1009 = vpop.f32.mrb[0].mxu0
        %v1010 = vadd.f32 %v833, %v1009
        %1011 = vmatprep.mubr.bf16.mxu0 0
        %1012 = vmatmul.mubr.bf16.gmra.mrb[0].mxu0 %v907
        %v1013 = vpop.f32.mrb[0].mxu0
        %v1014 = vadd.f32 %v838, %v1013
        %v1015 = vpop.f32.mrb[0].mxu0
        %v1016 = vadd.f32 %v838, %v1015
        %v1017 = vpop.f32.mrb[0].mxu0
        %v1018 = vadd.f32 %v843, %v1017
        %v1019 = vpop.f32.mrb[0].mxu0
        %v1020 = vadd.f32 %v843, %v1019
        %1021 = vdwg.mxu0
        %1022 = vmatprep.subr.bf16.mxu0 %v736
        %1023 = vmatpush1.bf16.msra.mxu0 %v735
        %1024 = vmatprep.subr.bf16.mxu0 %v744
        %1025 = vmatpush1.bf16.msra.mxu0 %v743
        %1026 = vmatprep.subr.bf16.mxu0 0
        %1027 = vmatpush1.bf16.msra.mxu0 0
        %1028 = vmatprep.subr.bf16.mxu0 0
        %1029 = vmatpush1.bf16.msra.mxu0 0
        %1030 = vmatprep.subr.bf16.mxu0 0
        %1031 = vmatpush1.bf16.msra.mxu0 0
        %1032 = vmatprep.subr.bf16.mxu0 0
        %1033 = vmatpush1.bf16.msra.mxu0 0
        %1034 = vmatprep.subr.bf16.mxu0 0
        %1035 = vmatpush1.bf16.msra.mxu0 0
        %1036 = vmatprep.subr.bf16.mxu0 0
        %1037 = vmatpush1.bf16.msra.mxu0 0
        %1038 = vmatprep.subr.bf16.mxu0 0
        %1039 = vmatpush1.bf16.msra.mxu0 0
        %1040 = vmatprep.subr.bf16.mxu0 0
        %1041 = vmatpush1.bf16.msra.mxu0 0
        %1042 = vmatprep.subr.bf16.mxu0 0
        %1043 = vmatpush1.bf16.msra.mxu0 0
        %1044 = vmatprep.subr.bf16.mxu0 0
        %1045 = vmatpush1.bf16.msra.mxu0 0
        %1046 = vmatprep.subr.bf16.mxu0 0
        %1047 = vmatpush1.bf16.msra.mxu0 0
        %1048 = vmatprep.subr.bf16.mxu0 0
        %1049 = vmatpush1.bf16.msra.mxu0 0
        %1050 = vmatprep.subr.bf16.mxu0 0
        %1051 = vmatpush1.bf16.msra.mxu0 0
        %1052 = vmatprep.subr.bf16.mxu0 0
        %1053 = vmatpush1.bf16.msra.mxu0 0
        %1054 = vmatprep.mubr.bf16.mxu0 0
        %1055 = vmatmul.mubr.bf16.gmra.mrb[0].mxu0 %v886
        %v1056 = vpop.f32.mrb[0].mxu0
        %v1057 = vadd.f32 %v768, %v1056
        %v1058 = vpop.f32.mrb[0].mxu0
        %v1059 = vadd.f32 %v768, %v1058
        %v1060 = vpop.f32.mrb[0].mxu0
        %v1061 = vadd.f32 %v773, %v1060
        %v1062 = vpop.f32.mrb[0].mxu0
        %v1063 = vadd.f32 %v773, %v1062
        %1064 = vmatprep.mubr.bf16.mxu0 0
        %1065 = vmatmul.mubr.bf16.gmra.mrb[0].mxu0 %v889
        %v1066 = vpop.f32.mrb[0].mxu0
        %v1067 = vadd.f32 %v778, %v1066
        %v1068 = vpop.f32.mrb[0].mxu0
        %v1069 = vadd.f32 %v778, %v1068
        %v1070 = vpop.f32.mrb[0].mxu0
        %v1071 = vadd.f32 %v783, %v1070
        %v1072 = vpop.f32.mrb[0].mxu0
        %v1073 = vadd.f32 %v783, %v1072
        %1074 = vmatprep.mubr.bf16.mxu0 0
        %1075 = vmatmul.mubr.bf16.gmra.mrb[0].mxu0 %v892
        %v1076 = vpop.f32.mrb[0].mxu0
        %v1077 = vadd.f32 %v788, %v1076
        %v1078 = vpop.f32.mrb[0].mxu0
        %v1079 = vadd.f32 %v788, %v1078
        %v1080 = vpop.f32.mrb[0].mxu0
        %v1081 = vadd.f32 %v793, %v1080
        %v1082 = vpop.f32.mrb[0].mxu0
        %v1083 = vadd.f32 %v793, %v1082
        %1084 = vmatprep.mubr.bf16.mxu0 0
        %1085 = vmatmul.mubr.bf16.gmra.mrb[0].mxu0 %v895
        %v1086 = vpop.f32.mrb[0].mxu0
        %v1087 = vadd.f32 %v798, %v1086
        %v1088 = vpop.f32.mrb[0].mxu0
        %v1089 = vadd.f32 %v798, %v1088
        %v1090 = vpop.f32.mrb[0].mxu0
        %v1091 = vadd.f32 %v803, %v1090
        %v1092 = vpop.f32.mrb[0].mxu0
        %v1093 = vadd.f32 %v803, %v1092
        %1094 = vmatprep.mubr.bf16.mxu0 0
        %1095 = vmatmul.mubr.bf16.gmra.mrb[0].mxu0 %v898
        %v1096 = vpop.f32.mrb[0].mxu0
        %v1097 = vadd.f32 %v808, %v1096
        %v1098 = vpop.f32.mrb[0].mxu0
        %v1099 = vadd.f32 %v808, %v1098
        %v1100 = vpop.f32.mrb[0].mxu0
        %v1101 = vadd.f32 %v813, %v1100
        %v1102 = vpop.f32.mrb[0].mxu0
        %v1103 = vadd.f32 %v813, %v1102
        %1104 = vmatprep.mubr.bf16.mxu0 0
        %1105 = vmatmul.mubr.bf16.gmra.mrb[0].mxu0 %v901
        %v1106 = vpop.f32.mrb[0].mxu0
        %v1107 = vadd.f32 %v818, %v1106
        %v1108 = vpop.f32.mrb[0].mxu0
        %v1109 = vadd.f32 %v818, %v1108
        %v1110 = vpop.f32.mrb[0].mxu0
        %v1111 = vadd.f32 %v823, %v1110
        %v1112 = vpop.f32.mrb[0].mxu0
        %v1113 = vadd.f32 %v823, %v1112
        %1114 = vmatprep.mubr.bf16.mxu0 0
        %1115 = vmatmul.mubr.bf16.gmra.mrb[0].mxu0 %v904
        %v1116 = vpop.f32.mrb[0].mxu0
        %v1117 = vadd.f32 %v828, %v1116
        %v1118 = vpop.f32.mrb[0].mxu0
        %v1119 = vadd.f32 %v828, %v1118
        %v1120 = vpop.f32.mrb[0].mxu0
        %v1121 = vadd.f32 %v833, %v1120
        %v1122 = vpop.f32.mrb[0].mxu0
        %v1123 = vadd.f32 %v833, %v1122
        %1124 = vmatprep.mubr.bf16.mxu0 0
        %1125 = vmatmul.mubr.bf16.gmra.mrb[0].mxu0 %v907
        %v1126 = vpop.f32.mrb[0].mxu0
        %v1127 = vadd.f32 %v838, %v1126
        %v1128 = vpop.f32.mrb[0].mxu0
        %v1129 = vadd.f32 %v838, %v1128
        %v1130 = vpop.f32.mrb[0].mxu0
        %v1131 = vadd.f32 %v843, %v1130
        %v1132 = vpop.f32.mrb[0].mxu0
        %v1133 = vadd.f32 %v843, %v1132
        %1134 = vdwg.mxu0
        %1135 = vmatprep.subr.bf16.mxu0 %v738
        %1136 = vmatpush1.bf16.msra.mxu0 %v737
        %1137 = vmatprep.subr.bf16.mxu0 %v746
        %1138 = vmatpush1.bf16.msra.mxu0 %v745
        %1139 = vmatprep.subr.bf16.mxu0 0
        %1140 = vmatpush1.bf16.msra.mxu0 0
        %1141 = vmatprep.subr.bf16.mxu0 0
        %1142 = vmatpush1.bf16.msra.mxu0 0
        %1143 = vmatprep.subr.bf16.mxu0 0
        %1144 = vmatpush1.bf16.msra.mxu0 0
        %1145 = vmatprep.subr.bf16.mxu0 0
        %1146 = vmatpush1.bf16.msra.mxu0 0
        %1147 = vmatprep.subr.bf16.mxu0 0
        %1148 = vmatpush1.bf16.msra.mxu0 0
        %1149 = vmatprep.subr.bf16.mxu0 0
        %1150 = vmatpush1.bf16.msra.mxu0 0
        %1151 = vmatprep.subr.bf16.mxu0 0
        %1152 = vmatpush1.bf16.msra.mxu0 0
        %1153 = vmatprep.subr.bf16.mxu0 0
        %1154 = vmatpush1.bf16.msra.mxu0 0
        %1155 = vmatprep.subr.bf16.mxu0 0
        %1156 = vmatpush1.bf16.msra.mxu0 0
        %1157 = vmatprep.subr.bf16.mxu0 0
        %1158 = vmatpush1.bf16.msra.mxu0 0
        %1159 = vmatprep.subr.bf16.mxu0 0
        %1160 = vmatpush1.bf16.msra.mxu0 0
        %1161 = vmatprep.subr.bf16.mxu0 0
        %1162 = vmatpush1.bf16.msra.mxu0 0
        %1163 = vmatprep.subr.bf16.mxu0 0
        %1164 = vmatpush1.bf16.msra.mxu0 0
        %1165 = vmatprep.subr.bf16.mxu0 0
        %1166 = vmatpush1.bf16.msra.mxu0 0
        %1167 = vmatprep.mubr.bf16.mxu0 0
        %1168 = vmatmul.mubr.bf16.gmra.mrb[0].mxu0 %v886
        %v1169 = vpop.f32.mrb[0].mxu0
        %v1170 = vadd.f32 %v768, %v1169
        %v1171 = vpop.f32.mrb[0].mxu0
        %v1172 = vadd.f32 %v768, %v1171
        %v1173 = vpop.f32.mrb[0].mxu0
        %v1174 = vadd.f32 %v773, %v1173
        %v1175 = vpop.f32.mrb[0].mxu0
        %v1176 = vadd.f32 %v773, %v1175
        %1177 = vmatprep.mubr.bf16.mxu0 0
        %1178 = vmatmul.mubr.bf16.gmra.mrb[0].mxu0 %v889
        %v1179 = vpop.f32.mrb[0].mxu0
        %v1180 = vadd.f32 %v778, %v1179
        %v1181 = vpop.f32.mrb[0].mxu0
        %v1182 = vadd.f32 %v778, %v1181
        %v1183 = vpop.f32.mrb[0].mxu0
        %v1184 = vadd.f32 %v783, %v1183
        %v1185 = vpop.f32.mrb[0].mxu0
        %v1186 = vadd.f32 %v783, %v1185
        %1187 = vmatprep.mubr.bf16.mxu0 0
        %1188 = vmatmul.mubr.bf16.gmra.mrb[0].mxu0 %v892
        %v1189 = vpop.f32.mrb[0].mxu0
        %v1190 = vadd.f32 %v788, %v1189
        %v1191 = vpop.f32.mrb[0].mxu0
        %v1192 = vadd.f32 %v788, %v1191
        %v1193 = vpop.f32.mrb[0].mxu0
        %v1194 = vadd.f32 %v793, %v1193
        %v1195 = vpop.f32.mrb[0].mxu0
        %v1196 = vadd.f32 %v793, %v1195
        %1197 = vmatprep.mubr.bf16.mxu0 0
        %1198 = vmatmul.mubr.bf16.gmra.mrb[0].mxu0 %v895
        %v1199 = vpop.f32.mrb[0].mxu0
        %v1200 = vadd.f32 %v798, %v1199
        %v1201 = vpop.f32.mrb[0].mxu0
        %v1202 = vadd.f32 %v798, %v1201
        %v1203 = vpop.f32.mrb[0].mxu0
        %v1204 = vadd.f32 %v803, %v1203
        %v1205 = vpop.f32.mrb[0].mxu0
        %v1206 = vadd.f32 %v803, %v1205
        %1207 = vmatprep.mubr.bf16.mxu0 0
        %1208 = vmatmul.mubr.bf16.gmra.mrb[0].mxu0 %v898
        %v1209 = vpop.f32.mrb[0].mxu0
        %v1210 = vadd.f32 %v808, %v1209
        %v1211 = vpop.f32.mrb[0].mxu0
        %v1212 = vadd.f32 %v808, %v1211
        %v1213 = vpop.f32.mrb[0].mxu0
        %v1214 = vadd.f32 %v813, %v1213
        %v1215 = vpop.f32.mrb[0].mxu0
        %v1216 = vadd.f32 %v813, %v1215
        %1217 = vmatprep.mubr.bf16.mxu0 0
        %1218 = vmatmul.mubr.bf16.gmra.mrb[0].mxu0 %v901
        %v1219 = vpop.f32.mrb[0].mxu0
        %v1220 = vadd.f32 %v818, %v1219
        %v1221 = vpop.f32.mrb[0].mxu0
        %v1222 = vadd.f32 %v818, %v1221
        %v1223 = vpop.f32.mrb[0].mxu0
        %v1224 = vadd.f32 %v823, %v1223
        %v1225 = vpop.f32.mrb[0].mxu0
        %v1226 = vadd.f32 %v823, %v1225
        %1227 = vmatprep.mubr.bf16.mxu0 0
        %1228 = vmatmul.mubr.bf16.gmra.mrb[0].mxu0 %v904
        %v1229 = vpop.f32.mrb[0].mxu0
        %v1230 = vadd.f32 %v828, %v1229
        %v1231 = vpop.f32.mrb[0].mxu0
        %v1232 = vadd.f32 %v828, %v1231
        %v1233 = vpop.f32.mrb[0].mxu0
        %v1234 = vadd.f32 %v833, %v1233
        %v1235 = vpop.f32.mrb[0].mxu0
        %v1236 = vadd.f32 %v833, %v1235
        %1237 = vmatprep.mubr.bf16.mxu0 0
        %1238 = vmatmul.mubr.bf16.gmra.mrb[0].mxu0 %v907
        %v1239 = vpop.f32.mrb[0].mxu0
        %v1240 = vadd.f32 %v838, %v1239
        %v1241 = vpop.f32.mrb[0].mxu0
        %v1242 = vadd.f32 %v838, %v1241
        %v1243 = vpop.f32.mrb[0].mxu0
        %v1244 = vadd.f32 %v843, %v1243
        %v1245 = vpop.f32.mrb[0].mxu0
        %v1246 = vadd.f32 %v843, %v1245
        %1247 = vdwg.mxu0
        %1248 = vmatprep.subr.bf16.mxu0 %v740
        %1249 = vmatpush1.bf16.msra.mxu0 %v739
        %1250 = vmatprep.subr.bf16.mxu0 %v748
        %1251 = vmatpush1.bf16.msra.mxu0 %v747
        %1252 = vmatprep.subr.bf16.mxu0 0
        %1253 = vmatpush1.bf16.msra.mxu0 0
        %1254 = vmatprep.subr.bf16.mxu0 0
        %1255 = vmatpush1.bf16.msra.mxu0 0
        %1256 = vmatprep.subr.bf16.mxu0 0
        %1257 = vmatpush1.bf16.msra.mxu0 0
        %1258 = vmatprep.subr.bf16.mxu0 0
        %1259 = vmatpush1.bf16.msra.mxu0 0
        %1260 = vmatprep.subr.bf16.mxu0 0
        %1261 = vmatpush1.bf16.msra.mxu0 0
        %1262 = vmatprep.subr.bf16.mxu0 0
        %1263 = vmatpush1.bf16.msra.mxu0 0
        %1264 = vmatprep.subr.bf16.mxu0 0
        %1265 = vmatpush1.bf16.msra.mxu0 0
        %1266 = vmatprep.subr.bf16.mxu0 0
        %1267 = vmatpush1.bf16.msra.mxu0 0
        %1268 = vmatprep.subr.bf16.mxu0 0
        %1269 = vmatpush1.bf16.msra.mxu0 0
        %1270 = vmatprep.subr.bf16.mxu0 0
        %1271 = vmatpush1.bf16.msra.mxu0 0
        %1272 = vmatprep.subr.bf16.mxu0 0
        %1273 = vmatpush1.bf16.msra.mxu0 0
        %1274 = vmatprep.subr.bf16.mxu0 0
        %1275 = vmatpush1.bf16.msra.mxu0 0
        %1276 = vmatprep.subr.bf16.mxu0 0
        %1277 = vmatpush1.bf16.msra.mxu0 0
        %1278 = vmatprep.subr.bf16.mxu0 0
        %1279 = vmatpush1.bf16.msra.mxu0 0
        %1280 = vmatprep.mubr.bf16.mxu0 0
        %1281 = vmatmul.mubr.bf16.gmra.mrb[0].mxu0 %v886
        %v1282 = vpop.f32.mrb[0].mxu0
        %v1283 = vadd.f32 %v768, %v1282
        %v1284 = vpop.f32.mrb[0].mxu0
        %v1285 = vadd.f32 %v768, %v1284
        %v1286 = vpop.f32.mrb[0].mxu0
        %v1287 = vadd.f32 %v773, %v1286
        %v1288 = vpop.f32.mrb[0].mxu0
        %v1289 = vadd.f32 %v773, %v1288
        %1290 = vmatprep.mubr.bf16.mxu0 0
        %1291 = vmatmul.mubr.bf16.gmra.mrb[0].mxu0 %v889
        %v1292 = vpop.f32.mrb[0].mxu0
        %v1293 = vadd.f32 %v778, %v1292
        %v1294 = vpop.f32.mrb[0].mxu0
        %v1295 = vadd.f32 %v778, %v1294
        %v1296 = vpop.f32.mrb[0].mxu0
        %v1297 = vadd.f32 %v783, %v1296
        %v1298 = vpop.f32.mrb[0].mxu0
        %v1299 = vadd.f32 %v783, %v1298
        %1300 = vmatprep.mubr.bf16.mxu0 0
        %1301 = vmatmul.mubr.bf16.gmra.mrb[0].mxu0 %v892
        %v1302 = vpop.f32.mrb[0].mxu0
        %v1303 = vadd.f32 %v788, %v1302
        %v1304 = vpop.f32.mrb[0].mxu0
        %v1305 = vadd.f32 %v788, %v1304
        %v1306 = vpop.f32.mrb[0].mxu0
        %v1307 = vadd.f32 %v793, %v1306
        %v1308 = vpop.f32.mrb[0].mxu0
        %v1309 = vadd.f32 %v793, %v1308
        %1310 = vmatprep.mubr.bf16.mxu0 0
        %1311 = vmatmul.mubr.bf16.gmra.mrb[0].mxu0 %v895
        %v1312 = vpop.f32.mrb[0].mxu0
        %v1313 = vadd.f32 %v798, %v1312
        %v1314 = vpop.f32.mrb[0].mxu0
        %v1315 = vadd.f32 %v798, %v1314
        %v1316 = vpop.f32.mrb[0].mxu0
        %v1317 = vadd.f32 %v803, %v1316
        %v1318 = vpop.f32.mrb[0].mxu0
        %v1319 = vadd.f32 %v803, %v1318
        %1320 = vmatprep.mubr.bf16.mxu0 0
        %1321 = vmatmul.mubr.bf16.gmra.mrb[0].mxu0 %v898
        %v1322 = vpop.f32.mrb[0].mxu0
        %v1323 = vadd.f32 %v808, %v1322
        %v1324 = vpop.f32.mrb[0].mxu0
        %v1325 = vadd.f32 %v808, %v1324
        %v1326 = vpop.f32.mrb[0].mxu0
        %v1327 = vadd.f32 %v813, %v1326
        %v1328 = vpop.f32.mrb[0].mxu0
        %v1329 = vadd.f32 %v813, %v1328
        %1330 = vmatprep.mubr.bf16.mxu0 0
        %1331 = vmatmul.mubr.bf16.gmra.mrb[0].mxu0 %v901
        %v1332 = vpop.f32.mrb[0].mxu0
        %v1333 = vadd.f32 %v818, %v1332
        %v1334 = vpop.f32.mrb[0].mxu0
        %v1335 = vadd.f32 %v818, %v1334
        %v1336 = vpop.f32.mrb[0].mxu0
        %v1337 = vadd.f32 %v823, %v1336
        %v1338 = vpop.f32.mrb[0].mxu0
        %v1339 = vadd.f32 %v823, %v1338
        %1340 = vmatprep.mubr.bf16.mxu0 0
        %1341 = vmatmul.mubr.bf16.gmra.mrb[0].mxu0 %v904
        %v1342 = vpop.f32.mrb[0].mxu0
        %v1343 = vadd.f32 %v828, %v1342
        %v1344 = vpop.f32.mrb[0].mxu0
        %v1345 = vadd.f32 %v828, %v1344
        %v1346 = vpop.f32.mrb[0].mxu0
        %v1347 = vadd.f32 %v833, %v1346
        %v1348 = vpop.f32.mrb[0].mxu0
        %v1349 = vadd.f32 %v833, %v1348
        %1350 = vmatprep.mubr.bf16.mxu0 0
        %1351 = vmatmul.mubr.bf16.gmra.mrb[0].mxu0 %v907
        %v1352 = vpop.f32.mrb[0].mxu0
        %v1353 = vadd.f32 %v838, %v1352
        %v1354 = vpop.f32.mrb[0].mxu0
        %v1355 = vadd.f32 %v838, %v1354
        %v1356 = vpop.f32.mrb[0].mxu0
        %v1357 = vadd.f32 %v843, %v1356
        %v1358 = vpop.f32.mrb[0].mxu0
        %v1359 = vadd.f32 %v843, %v1358
        %1360 = vdwg.mxu0
        %v1361 = vmax.f32 %v944, 0.0
        %v1362 = vmax.f32 %v946, 0.0
        %v1363 = vmax.f32 %v1057, 0.0
        %v1364 = vmax.f32 %v1059, 0.0
        %v1365 = vmax.f32 %v1170, 0.0
        %v1366 = vmax.f32 %v1172, 0.0
        %v1367 = vmax.f32 %v1283, 0.0
        %v1368 = vmax.f32 %v1285, 0.0
        %v1369 = vmax.f32 %v948, 0.0
        %v1370 = vmax.f32 %v950, 0.0
        %v1371 = vmax.f32 %v1061, 0.0
        %v1372 = vmax.f32 %v1063, 0.0
        %v1373 = vmax.f32 %v1174, 0.0
        %v1374 = vmax.f32 %v1176, 0.0
        %v1375 = vmax.f32 %v1287, 0.0
        %v1376 = vmax.f32 %v1289, 0.0
        %v1377 = vmax.f32 %v954, 0.0
        %v1378 = vmax.f32 %v956, 0.0
        %v1379 = vmax.f32 %v1067, 0.0
        %v1380 = vmax.f32 %v1069, 0.0
        %v1381 = vmax.f32 %v1180, 0.0
        %v1382 = vmax.f32 %v1182, 0.0
        %v1383 = vmax.f32 %v1293, 0.0
        %v1384 = vmax.f32 %v1295, 0.0
        %v1385 = vmax.f32 %v958, 0.0
        %v1386 = vmax.f32 %v960, 0.0
        %v1387 = vmax.f32 %v1071, 0.0
        %v1388 = vmax.f32 %v1073, 0.0
        %v1389 = vmax.f32 %v1184, 0.0
        %v1390 = vmax.f32 %v1186, 0.0
        %v1391 = vmax.f32 %v1297, 0.0
        %v1392 = vmax.f32 %v1299, 0.0
        %v1393 = vmax.f32 %v964, 0.0
        %v1394 = vmax.f32 %v966, 0.0
        %v1395 = vmax.f32 %v1077, 0.0
        %v1396 = vmax.f32 %v1079, 0.0
        %v1397 = vmax.f32 %v1190, 0.0
        %v1398 = vmax.f32 %v1192, 0.0
        %v1399 = vmax.f32 %v1303, 0.0
        %v1400 = vmax.f32 %v1305, 0.0
        %v1401 = vmax.f32 %v968, 0.0
        %v1402 = vmax.f32 %v970, 0.0
        %v1403 = vmax.f32 %v1081, 0.0
        %v1404 = vmax.f32 %v1083, 0.0
        %v1405 = vmax.f32 %v1194, 0.0
        %v1406 = vmax.f32 %v1196, 0.0
        %v1407 = vmax.f32 %v1307, 0.0
        %v1408 = vmax.f32 %v1309, 0.0
        %v1409 = vmax.f32 %v974, 0.0
        %v1410 = vmax.f32 %v976, 0.0
        %v1411 = vmax.f32 %v1087, 0.0
        %v1412 = vmax.f32 %v1089, 0.0
        %v1413 = vmax.f32 %v1200, 0.0
        %v1414 = vmax.f32 %v1202, 0.0
        %v1415 = vmax.f32 %v1313, 0.0
        %v1416 = vmax.f32 %v1315, 0.0
        %v1417 = vmax.f32 %v978, 0.0
        %v1418 = vmax.f32 %v980, 0.0
        %v1419 = vmax.f32 %v1091, 0.0
        %v1420 = vmax.f32 %v1093, 0.0
        %v1421 = vmax.f32 %v1204, 0.0
        %v1422 = vmax.f32 %v1206, 0.0
        %v1423 = vmax.f32 %v1317, 0.0
        %v1424 = vmax.f32 %v1319, 0.0
        %v1425 = vmax.f32 %v984, 0.0
        %v1426 = vmax.f32 %v986, 0.0
        %v1427 = vmax.f32 %v1097, 0.0
        %v1428 = vmax.f32 %v1099, 0.0
        %v1429 = vmax.f32 %v1210, 0.0
        %v1430 = vmax.f32 %v1212, 0.0
        %v1431 = vmax.f32 %v1323, 0.0
        %v1432 = vmax.f32 %v1325, 0.0
        %v1433 = vmax.f32 %v988, 0.0
        %v1434 = vmax.f32 %v990, 0.0
        %v1435 = vmax.f32 %v1101, 0.0
        %v1436 = vmax.f32 %v1103, 0.0
        %v1437 = vmax.f32 %v1214, 0.0
        %v1438 = vmax.f32 %v1216, 0.0
        %v1439 = vmax.f32 %v1327, 0.0
        %v1440 = vmax.f32 %v1329, 0.0
        %v1441 = vmax.f32 %v994, 0.0
        %v1442 = vmax.f32 %v996, 0.0
        %v1443 = vmax.f32 %v1107, 0.0
        %v1444 = vmax.f32 %v1109, 0.0
        %v1445 = vmax.f32 %v1220, 0.0
        %v1446 = vmax.f32 %v1222, 0.0
        %v1447 = vmax.f32 %v1333, 0.0
        %v1448 = vmax.f32 %v1335, 0.0
        %v1449 = vmax.f32 %v998, 0.0
        %v1450 = vmax.f32 %v1000, 0.0
        %v1451 = vmax.f32 %v1111, 0.0
        %v1452 = vmax.f32 %v1113, 0.0
        %v1453 = vmax.f32 %v1224, 0.0
        %v1454 = vmax.f32 %v1226, 0.0
        %v1455 = vmax.f32 %v1337, 0.0
        %v1456 = vmax.f32 %v1339, 0.0
        %v1457 = vmax.f32 %v1004, 0.0
        %v1458 = vmax.f32 %v1006, 0.0
        %v1459 = vmax.f32 %v1117, 0.0
        %v1460 = vmax.f32 %v1119, 0.0
        %v1461 = vmax.f32 %v1230, 0.0
        %v1462 = vmax.f32 %v1232, 0.0
        %v1463 = vmax.f32 %v1343, 0.0
        %v1464 = vmax.f32 %v1345, 0.0
        %v1465 = vmax.f32 %v1008, 0.0
        %v1466 = vmax.f32 %v1010, 0.0
        %v1467 = vmax.f32 %v1121, 0.0
        %v1468 = vmax.f32 %v1123, 0.0
        %v1469 = vmax.f32 %v1234, 0.0
        %v1470 = vmax.f32 %v1236, 0.0
        %v1471 = vmax.f32 %v1347, 0.0
        %v1472 = vmax.f32 %v1349, 0.0
        %v1473 = vmax.f32 %v1014, 0.0
        %v1474 = vmax.f32 %v1016, 0.0
        %v1475 = vmax.f32 %v1127, 0.0
        %v1476 = vmax.f32 %v1129, 0.0
        %v1477 = vmax.f32 %v1240, 0.0
        %v1478 = vmax.f32 %v1242, 0.0
        %v1479 = vmax.f32 %v1353, 0.0
        %v1480 = vmax.f32 %v1355, 0.0
        %v1481 = vmax.f32 %v1018, 0.0
        %v1482 = vmax.f32 %v1020, 0.0
        %v1483 = vmax.f32 %v1131, 0.0
        %v1484 = vmax.f32 %v1133, 0.0
        %v1485 = vmax.f32 %v1244, 0.0
        %v1486 = vmax.f32 %v1246, 0.0
        %v1487 = vmax.f32 %v1357, 0.0
        %v1488 = vmax.f32 %v1359, 0.0
        %v1489 = vld [vmem:[%s5] sm:$0xff]
        %v1490 = vld [vmem:[%s5 + $0x8] sm:$0xff]
        %v1491 = vld [vmem:[%s5 + $0x10] sm:$0xff]
        %v1492 = vld [vmem:[%s5 + $0x18] sm:$0xff]
        %v1493 = vld [vmem:[%s5 + $0x20] sm:$0xff]
        %v1494 = vld [vmem:[%s5 + $0x28] sm:$0xff]
        %v1495 = vld [vmem:[%s5 + $0x30] sm:$0xff]
        %v1496 = vld [vmem:[%s5 + $0x38] sm:$0xff]
        %v1497 = vld [vmem:[%s5 + $0x40] sm:$0xff]
        %v1498 = vld [vmem:[%s5 + $0x48] sm:$0xff]
        %v1499 = vld [vmem:[%s5 + $0x50] sm:$0xff]
        %v1500 = vld [vmem:[%s5 + $0x58] sm:$0xff]
        %v1501 = vld [vmem:[%s5 + $0x60] sm:$0xff]
        %v1502 = vld [vmem:[%s5 + $0x68] sm:$0xff]
        %v1503 = vld [vmem:[%s5 + $0x70] sm:$0xff]
        %v1504 = vld [vmem:[%s5 + $0x78] sm:$0xff]
        %1506 = vset.pattern.permute.xlu0 0
        %1507 = vperm.xlu0 %1506, %v1489
        %v1508 = vpop.permute.xlu0 %1507
        %1511 = vset.pattern.permute.xlu0 0
        %1512 = vperm.xlu0 %1511, %v1490
        %v1513 = vpop.permute.xlu0 %1512
        %1516 = vset.pattern.permute.xlu0 0
        %1517 = vperm.xlu0 %1516, %v1491
        %v1518 = vpop.permute.xlu0 %1517
        %1521 = vset.pattern.permute.xlu0 0
        %1522 = vperm.xlu0 %1521, %v1492
        %v1523 = vpop.permute.xlu0 %1522
        %1526 = vset.pattern.permute.xlu0 0
        %1527 = vperm.xlu0 %1526, %v1493
        %v1528 = vpop.permute.xlu0 %1527
        %1531 = vset.pattern.permute.xlu0 0
        %1532 = vperm.xlu0 %1531, %v1494
        %v1533 = vpop.permute.xlu0 %1532
        %1536 = vset.pattern.permute.xlu0 0
        %1537 = vperm.xlu0 %1536, %v1495
        %v1538 = vpop.permute.xlu0 %1537
        %1541 = vset.pattern.permute.xlu0 0
        %1542 = vperm.xlu0 %1541, %v1496
        %v1543 = vpop.permute.xlu0 %1542
        %1546 = vset.pattern.permute.xlu0 0
        %1547 = vperm.xlu0 %1546, %v1497
        %v1548 = vpop.permute.xlu0 %1547
        %1551 = vset.pattern.permute.xlu0 0
        %1552 = vperm.xlu0 %1551, %v1498
        %v1553 = vpop.permute.xlu0 %1552
        %1556 = vset.pattern.permute.xlu0 0
        %1557 = vperm.xlu0 %1556, %v1499
        %v1558 = vpop.permute.xlu0 %1557
        %1561 = vset.pattern.permute.xlu0 0
        %1562 = vperm.xlu0 %1561, %v1500
        %v1563 = vpop.permute.xlu0 %1562
        %1566 = vset.pattern.permute.xlu0 0
        %1567 = vperm.xlu0 %1566, %v1501
        %v1568 = vpop.permute.xlu0 %1567
        %1571 = vset.pattern.permute.xlu0 0
        %1572 = vperm.xlu0 %1571, %v1502
        %v1573 = vpop.permute.xlu0 %1572
        %1576 = vset.pattern.permute.xlu0 0
        %1577 = vperm.xlu0 %1576, %v1503
        %v1578 = vpop.permute.xlu0 %1577
        %1581 = vset.pattern.permute.xlu0 0
        %1582 = vperm.xlu0 %1581, %v1504
        %v1583 = vpop.permute.xlu0 %1582
        %v1585 = vmul.f32 %v1361, %v1508
        %v1586 = vmul.f32 %v1362, %v1508
        %v1587 = vmul.f32 %v1363, %v1508
        %v1588 = vmul.f32 %v1364, %v1508
        %v1589 = vmul.f32 %v1365, %v1508
        %v1590 = vmul.f32 %v1366, %v1508
        %v1591 = vmul.f32 %v1367, %v1508
        %v1592 = vmul.f32 %v1368, %v1508
        %v1593 = vmul.f32 %v1369, %v1513
        %v1594 = vmul.f32 %v1370, %v1513
        %v1595 = vmul.f32 %v1371, %v1513
        %v1596 = vmul.f32 %v1372, %v1513
        %v1597 = vmul.f32 %v1373, %v1513
        %v1598 = vmul.f32 %v1374, %v1513
        %v1599 = vmul.f32 %v1375, %v1513
        %v1600 = vmul.f32 %v1376, %v1513
        %v1601 = vmul.f32 %v1377, %v1518
        %v1602 = vmul.f32 %v1378, %v1518
        %v1603 = vmul.f32 %v1379, %v1518
        %v1604 = vmul.f32 %v1380, %v1518
        %v1605 = vmul.f32 %v1381, %v1518
        %v1606 = vmul.f32 %v1382, %v1518
        %v1607 = vmul.f32 %v1383, %v1518
        %v1608 = vmul.f32 %v1384, %v1518
        %v1609 = vmul.f32 %v1385, %v1523
        %v1610 = vmul.f32 %v1386, %v1523
        %v1611 = vmul.f32 %v1387, %v1523
        %v1612 = vmul.f32 %v1388, %v1523
        %v1613 = vmul.f32 %v1389, %v1523
        %v1614 = vmul.f32 %v1390, %v1523
        %v1615 = vmul.f32 %v1391, %v1523
        %v1616 = vmul.f32 %v1392, %v1523
        %v1617 = vmul.f32 %v1393, %v1528
        %v1618 = vmul.f32 %v1394, %v1528
        %v1619 = vmul.f32 %v1395, %v1528
        %v1620 = vmul.f32 %v1396, %v1528
        %v1621 = vmul.f32 %v1397, %v1528
        %v1622 = vmul.f32 %v1398, %v1528
        %v1623 = vmul.f32 %v1399, %v1528
        %v1624 = vmul.f32 %v1400, %v1528
        %v1625 = vmul.f32 %v1401, %v1533
        %v1626 = vmul.f32 %v1402, %v1533
        %v1627 = vmul.f32 %v1403, %v1533
        %v1628 = vmul.f32 %v1404, %v1533
        %v1629 = vmul.f32 %v1405, %v1533
        %v1630 = vmul.f32 %v1406, %v1533
        %v1631 = vmul.f32 %v1407, %v1533
        %v1632 = vmul.f32 %v1408, %v1533
        %v1633 = vmul.f32 %v1409, %v1538
        %v1634 = vmul.f32 %v1410, %v1538
        %v1635 = vmul.f32 %v1411, %v1538
        %v1636 = vmul.f32 %v1412, %v1538
        %v1637 = vmul.f32 %v1413, %v1538
        %v1638 = vmul.f32 %v1414, %v1538
        %v1639 = vmul.f32 %v1415, %v1538
        %v1640 = vmul.f32 %v1416, %v1538
        %v1641 = vmul.f32 %v1417, %v1543
        %v1642 = vmul.f32 %v1418, %v1543
        %v1643 = vmul.f32 %v1419, %v1543
        %v1644 = vmul.f32 %v1420, %v1543
        %v1645 = vmul.f32 %v1421, %v1543
        %v1646 = vmul.f32 %v1422, %v1543
        %v1647 = vmul.f32 %v1423, %v1543
        %v1648 = vmul.f32 %v1424, %v1543
        %v1649 = vmul.f32 %v1425, %v1548
        %v1650 = vmul.f32 %v1426, %v1548
        %v1651 = vmul.f32 %v1427, %v1548
        %v1652 = vmul.f32 %v1428, %v1548
        %v1653 = vmul.f32 %v1429, %v1548
        %v1654 = vmul.f32 %v1430, %v1548
        %v1655 = vmul.f32 %v1431, %v1548
        %v1656 = vmul.f32 %v1432, %v1548
        %v1657 = vmul.f32 %v1433, %v1553
        %v1658 = vmul.f32 %v1434, %v1553
        %v1659 = vmul.f32 %v1435, %v1553
        %v1660 = vmul.f32 %v1436, %v1553
        %v1661 = vmul.f32 %v1437, %v1553
        %v1662 = vmul.f32 %v1438, %v1553
        %v1663 = vmul.f32 %v1439, %v1553
        %v1664 = vmul.f32 %v1440, %v1553
        %v1665 = vmul.f32 %v1441, %v1558
        %v1666 = vmul.f32 %v1442, %v1558
        %v1667 = vmul.f32 %v1443, %v1558
        %v1668 = vmul.f32 %v1444, %v1558
        %v1669 = vmul.f32 %v1445, %v1558
        %v1670 = vmul.f32 %v1446, %v1558
        %v1671 = vmul.f32 %v1447, %v1558
        %v1672 = vmul.f32 %v1448, %v1558
        %v1673 = vmul.f32 %v1449, %v1563
        %v1674 = vmul.f32 %v1450, %v1563
        %v1675 = vmul.f32 %v1451, %v1563
        %v1676 = vmul.f32 %v1452, %v1563
        %v1677 = vmul.f32 %v1453, %v1563
        %v1678 = vmul.f32 %v1454, %v1563
        %v1679 = vmul.f32 %v1455, %v1563
        %v1680 = vmul.f32 %v1456, %v1563
        %v1681 = vmul.f32 %v1457, %v1568
        %v1682 = vmul.f32 %v1458, %v1568
        %v1683 = vmul.f32 %v1459, %v1568
        %v1684 = vmul.f32 %v1460, %v1568
        %v1685 = vmul.f32 %v1461, %v1568
        %v1686 = vmul.f32 %v1462, %v1568
        %v1687 = vmul.f32 %v1463, %v1568
        %v1688 = vmul.f32 %v1464, %v1568
        %v1689 = vmul.f32 %v1465, %v1573
        %v1690 = vmul.f32 %v1466, %v1573
        %v1691 = vmul.f32 %v1467, %v1573
        %v1692 = vmul.f32 %v1468, %v1573
        %v1693 = vmul.f32 %v1469, %v1573
        %v1694 = vmul.f32 %v1470, %v1573
        %v1695 = vmul.f32 %v1471, %v1573
        %v1696 = vmul.f32 %v1472, %v1573
        %v1697 = vmul.f32 %v1473, %v1578
        %v1698 = vmul.f32 %v1474, %v1578
        %v1699 = vmul.f32 %v1475, %v1578
        %v1700 = vmul.f32 %v1476, %v1578
        %v1701 = vmul.f32 %v1477, %v1578
        %v1702 = vmul.f32 %v1478, %v1578
        %v1703 = vmul.f32 %v1479, %v1578
        %v1704 = vmul.f32 %v1480, %v1578
        %v1705 = vmul.f32 %v1481, %v1583
        %v1706 = vmul.f32 %v1482, %v1583
        %v1707 = vmul.f32 %v1483, %v1583
        %v1708 = vmul.f32 %v1484, %v1583
        %v1709 = vmul.f32 %v1485, %v1583
        %v1710 = vmul.f32 %v1486, %v1583
        %v1711 = vmul.f32 %v1487, %v1583
        %v1712 = vmul.f32 %v1488, %v1583
        %v1713 = vadd.f32 %v1585, %v1593
        %v1714 = vadd.f32 %v1713, %v1601
        %v1715 = vadd.f32 %v1714, %v1609
        %v1716 = vadd.f32 %v1715, %v1617
        %v1717 = vadd.f32 %v1716, %v1625
        %v1718 = vadd.f32 %v1717, %v1633
        %v1719 = vadd.f32 %v1718, %v1641
        %v1720 = vadd.f32 %v1719, %v1649
        %v1721 = vadd.f32 %v1720, %v1657
        %v1722 = vadd.f32 %v1721, %v1665
        %v1723 = vadd.f32 %v1722, %v1673
        %v1724 = vadd.f32 %v1723, %v1681
        %v1725 = vadd.f32 %v1724, %v1689
        %v1726 = vadd.f32 %v1725, %v1697
        %v1727 = vadd.f32 %v1726, %v1705
        %v1728 = vrot.slane %v1727, 4
        %v1729 = vadd.f32 %v1727, %v1728
        %v1730 = vrot.slane %v1729, 2
        %v1731 = vadd.f32 %v1729, %v1730
        %v1732 = vrot.slane %v1731, 1
        %v1733 = vadd.f32 %v1731, %v1732
        %v1734 = vadd.f32 %v1586, %v1594
        %v1735 = vadd.f32 %v1734, %v1602
        %v1736 = vadd.f32 %v1735, %v1610
        %v1737 = vadd.f32 %v1736, %v1618
        %v1738 = vadd.f32 %v1737, %v1626
        %v1739 = vadd.f32 %v1738, %v1634
        %v1740 = vadd.f32 %v1739, %v1642
        %v1741 = vadd.f32 %v1740, %v1650
        %v1742 = vadd.f32 %v1741, %v1658
        %v1743 = vadd.f32 %v1742, %v1666
        %v1744 = vadd.f32 %v1743, %v1674
        %v1745 = vadd.f32 %v1744, %v1682
        %v1746 = vadd.f32 %v1745, %v1690
        %v1747 = vadd.f32 %v1746, %v1698
        %v1748 = vadd.f32 %v1747, %v1706
        %v1749 = vrot.slane %v1748, 4
        %v1750 = vadd.f32 %v1748, %v1749
        %v1751 = vrot.slane %v1750, 2
        %v1752 = vadd.f32 %v1750, %v1751
        %v1753 = vrot.slane %v1752, 1
        %v1754 = vadd.f32 %v1752, %v1753
        %v1755 = vadd.f32 %v1587, %v1595
        %v1756 = vadd.f32 %v1755, %v1603
        %v1757 = vadd.f32 %v1756, %v1611
        %v1758 = vadd.f32 %v1757, %v1619
        %v1759 = vadd.f32 %v1758, %v1627
        %v1760 = vadd.f32 %v1759, %v1635
        %v1761 = vadd.f32 %v1760, %v1643
        %v1762 = vadd.f32 %v1761, %v1651
        %v1763 = vadd.f32 %v1762, %v1659
        %v1764 = vadd.f32 %v1763, %v1667
        %v1765 = vadd.f32 %v1764, %v1675
        %v1766 = vadd.f32 %v1765, %v1683
        %v1767 = vadd.f32 %v1766, %v1691
        %v1768 = vadd.f32 %v1767, %v1699
        %v1769 = vadd.f32 %v1768, %v1707
        %v1770 = vrot.slane %v1769, 4
        %v1771 = vadd.f32 %v1769, %v1770
        %v1772 = vrot.slane %v1771, 2
        %v1773 = vadd.f32 %v1771, %v1772
        %v1774 = vrot.slane %v1773, 1
        %v1775 = vadd.f32 %v1773, %v1774
        %v1776 = vadd.f32 %v1588, %v1596
        %v1777 = vadd.f32 %v1776, %v1604
        %v1778 = vadd.f32 %v1777, %v1612
        %v1779 = vadd.f32 %v1778, %v1620
        %v1780 = vadd.f32 %v1779, %v1628
        %v1781 = vadd.f32 %v1780, %v1636
        %v1782 = vadd.f32 %v1781, %v1644
        %v1783 = vadd.f32 %v1782, %v1652
        %v1784 = vadd.f32 %v1783, %v1660
        %v1785 = vadd.f32 %v1784, %v1668
        %v1786 = vadd.f32 %v1785, %v1676
        %v1787 = vadd.f32 %v1786, %v1684
        %v1788 = vadd.f32 %v1787, %v1692
        %v1789 = vadd.f32 %v1788, %v1700
        %v1790 = vadd.f32 %v1789, %v1708
        %v1791 = vrot.slane %v1790, 4
        %v1792 = vadd.f32 %v1790, %v1791
        %v1793 = vrot.slane %v1792, 2
        %v1794 = vadd.f32 %v1792, %v1793
        %v1795 = vrot.slane %v1794, 1
        %v1796 = vadd.f32 %v1794, %v1795
        %v1797 = vadd.f32 %v1589, %v1597
        %v1798 = vadd.f32 %v1797, %v1605
        %v1799 = vadd.f32 %v1798, %v1613
        %v1800 = vadd.f32 %v1799, %v1621
        %v1801 = vadd.f32 %v1800, %v1629
        %v1802 = vadd.f32 %v1801, %v1637
        %v1803 = vadd.f32 %v1802, %v1645
        %v1804 = vadd.f32 %v1803, %v1653
        %v1805 = vadd.f32 %v1804, %v1661
        %v1806 = vadd.f32 %v1805, %v1669
        %v1807 = vadd.f32 %v1806, %v1677
        %v1808 = vadd.f32 %v1807, %v1685
        %v1809 = vadd.f32 %v1808, %v1693
        %v1810 = vadd.f32 %v1809, %v1701
        %v1811 = vadd.f32 %v1810, %v1709
        %v1812 = vrot.slane %v1811, 4
        %v1813 = vadd.f32 %v1811, %v1812
        %v1814 = vrot.slane %v1813, 2
        %v1815 = vadd.f32 %v1813, %v1814
        %v1816 = vrot.slane %v1815, 1
        %v1817 = vadd.f32 %v1815, %v1816
        %v1818 = vadd.f32 %v1590, %v1598
        %v1819 = vadd.f32 %v1818, %v1606
        %v1820 = vadd.f32 %v1819, %v1614
        %v1821 = vadd.f32 %v1820, %v1622
        %v1822 = vadd.f32 %v1821, %v1630
        %v1823 = vadd.f32 %v1822, %v1638
        %v1824 = vadd.f32 %v1823, %v1646
        %v1825 = vadd.f32 %v1824, %v1654
        %v1826 = vadd.f32 %v1825, %v1662
        %v1827 = vadd.f32 %v1826, %v1670
        %v1828 = vadd.f32 %v1827, %v1678
        %v1829 = vadd.f32 %v1828, %v1686
        %v1830 = vadd.f32 %v1829, %v1694
        %v1831 = vadd.f32 %v1830, %v1702
        %v1832 = vadd.f32 %v1831, %v1710
        %v1833 = vrot.slane %v1832, 4
        %v1834 = vadd.f32 %v1832, %v1833
        %v1835 = vrot.slane %v1834, 2
        %v1836 = vadd.f32 %v1834, %v1835
        %v1837 = vrot.slane %v1836, 1
        %v1838 = vadd.f32 %v1836, %v1837
        %v1839 = vadd.f32 %v1591, %v1599
        %v1840 = vadd.f32 %v1839, %v1607
        %v1841 = vadd.f32 %v1840, %v1615
        %v1842 = vadd.f32 %v1841, %v1623
        %v1843 = vadd.f32 %v1842, %v1631
        %v1844 = vadd.f32 %v1843, %v1639
        %v1845 = vadd.f32 %v1844, %v1647
        %v1846 = vadd.f32 %v1845, %v1655
        %v1847 = vadd.f32 %v1846, %v1663
        %v1848 = vadd.f32 %v1847, %v1671
        %v1849 = vadd.f32 %v1848, %v1679
        %v1850 = vadd.f32 %v1849, %v1687
        %v1851 = vadd.f32 %v1850, %v1695
        %v1852 = vadd.f32 %v1851, %v1703
        %v1853 = vadd.f32 %v1852, %v1711
        %v1854 = vrot.slane %v1853, 4
        %v1855 = vadd.f32 %v1853, %v1854
        %v1856 = vrot.slane %v1855, 2
        %v1857 = vadd.f32 %v1855, %v1856
        %v1858 = vrot.slane %v1857, 1
        %v1859 = vadd.f32 %v1857, %v1858
        %v1860 = vadd.f32 %v1592, %v1600
        %v1861 = vadd.f32 %v1860, %v1608
        %v1862 = vadd.f32 %v1861, %v1616
        %v1863 = vadd.f32 %v1862, %v1624
        %v1864 = vadd.f32 %v1863, %v1632
        %v1865 = vadd.f32 %v1864, %v1640
        %v1866 = vadd.f32 %v1865, %v1648
        %v1867 = vadd.f32 %v1866, %v1656
        %v1868 = vadd.f32 %v1867, %v1664
        %v1869 = vadd.f32 %v1868, %v1672
        %v1870 = vadd.f32 %v1869, %v1680
        %v1871 = vadd.f32 %v1870, %v1688
        %v1872 = vadd.f32 %v1871, %v1696
        %v1873 = vadd.f32 %v1872, %v1704
        %v1874 = vadd.f32 %v1873, %v1712
        %v1875 = vrot.slane %v1874, 4
        %v1876 = vadd.f32 %v1874, %v1875
        %v1877 = vrot.slane %v1876, 2
        %v1878 = vadd.f32 %v1876, %v1877
        %v1879 = vrot.slane %v1878, 1
        %v1880 = vadd.f32 %v1878, %v1879
        %v1881 = vld [vmem:[#allocation2] sm:$0x1]
        %1883 = vset.pattern.permute.xlu0 0
        %1884 = vperm.xlu0 %1883, %v1881
        %v1885 = vpop.permute.xlu0 %1884
        %v1887 = vlaneseq
        %v1888 = vshrl.u32 %v1887, 7
        %v1889 = vsub.s32 0, %v1888
        %v1890 = vrot.slane %v1885, %v1889
        %v1891 = vadd.f32 %v1733, %v1890
        %v1892 = vadd.f32 %v1754, %v1890
        %v1893 = vadd.f32 %v1775, %v1890
        %v1894 = vadd.f32 %v1796, %v1890
        %v1895 = vadd.f32 %v1817, %v1890
        %v1896 = vadd.f32 %v1838, %v1890
        %v1897 = vadd.f32 %v1859, %v1890
        %v1898 = vadd.f32 %v1880, %v1890
        %v1899 = vxor.u32 %v1891, 2147483648
        %v1900 = vxor.u32 %v1892, 2147483648
        %v1901 = vxor.u32 %v1893, 2147483648
        %v1902 = vxor.u32 %v1894, 2147483648
        %v1903 = vxor.u32 %v1895, 2147483648
        %v1904 = vxor.u32 %v1896, 2147483648
        %v1905 = vxor.u32 %v1897, 2147483648
        %v1906 = vxor.u32 %v1898, 2147483648
        %v1907 = vmul.f32 %v1899, 1.442695
        %v1908 = vpow.pop %v1907
        %v1909 = vmul.f32 %v1900, 1.442695
        %v1910 = vpow.pop %v1909
        %v1911 = vmul.f32 %v1901, 1.442695
        %v1912 = vpow.pop %v1911
        %v1913 = vmul.f32 %v1902, 1.442695
        %v1914 = vpow.pop %v1913
        %v1915 = vmul.f32 %v1903, 1.442695
        %v1916 = vpow.pop %v1915
        %v1917 = vmul.f32 %v1904, 1.442695
        %v1918 = vpow.pop %v1917
        %v1919 = vmul.f32 %v1905, 1.442695
        %v1920 = vpow.pop %v1919
        %v1921 = vmul.f32 %v1906, 1.442695
        %v1922 = vpow.pop %v1921
        %v1923 = vadd.f32 %v1908, 1.0
        %v1924 = vadd.f32 %v1910, 1.0
        %v1925 = vadd.f32 %v1912, 1.0
        %v1926 = vadd.f32 %v1914, 1.0
        %v1927 = vadd.f32 %v1916, 1.0
        %v1928 = vadd.f32 %v1918, 1.0
        %v1929 = vadd.f32 %v1920, 1.0
        %v1930 = vadd.f32 %v1922, 1.0
        %v1931 = vrcp.pop %v1923
        %v1932 = vmul.f32 1.0, %v1931
        %v1933 = vrcp.pop %v1924
        %v1934 = vmul.f32 1.0, %v1933
        %v1935 = vrcp.pop %v1925
        %v1936 = vmul.f32 1.0, %v1935
        %v1937 = vrcp.pop %v1926
        %v1938 = vmul.f32 1.0, %v1937
        %v1939 = vrcp.pop %v1927
        %v1940 = vmul.f32 1.0, %v1939
        %v1941 = vrcp.pop %v1928
        %v1942 = vmul.f32 1.0, %v1941
        %v1943 = vrcp.pop %v1929
        %v1944 = vmul.f32 1.0, %v1943
        %v1945 = vrcp.pop %v1930
        %v1946 = vmul.f32 1.0, %v1945
        %v1955 = vcombine.low %v1932, %v1934
        %v1956 = vcombine.low %v1936, %v1938
        %v1957 = vcombine.low %v1940, %v1942
        %v1958 = vcombine.low %v1944, %v1946
        %v1960 = vunpack.c.l.s4 1966171168
        %v1961 = vunpack.c.0.s8 %v1960
        %v1962 = vlaneseq
        %v1963 = vshrl.u32 %v1962, 7
        %v1964 = vsub.s32 %v1961, %v1963
        %v1965 = vrot.slane %v1955, %v1964
        %v1967 = vunpack.c.l.s4 1966171168
        %v1968 = vunpack.c.0.s8 %v1967
        %v1969 = vlaneseq
        %v1970 = vshrl.u32 %v1969, 7
        %v1971 = vsub.s32 %v1968, %v1970
        %v1972 = vrot.slane %v1956, %v1971
        %v1974 = vunpack.c.l.s4 1966171168
        %v1975 = vunpack.c.0.s8 %v1974
        %v1976 = vlaneseq
        %v1977 = vshrl.u32 %v1976, 7
        %v1978 = vsub.s32 %v1975, %v1977
        %v1979 = vrot.slane %v1957, %v1978
        %v1981 = vunpack.c.l.s4 1966171168
        %v1982 = vunpack.c.0.s8 %v1981
        %v1983 = vlaneseq
        %v1984 = vshrl.u32 %v1983, 7
        %v1985 = vsub.s32 %v1982, %v1984
        %v1986 = vrot.slane %v1958, %v1985
        %v1987 = vcombine.low %v1965, %v1972
        %v1988 = vcombine.low %v1979, %v1986
        %v1990 = vunpack.c.l.s4 1966171168
        %v1991 = vunpack.c.0.s8 %v1990
        %v1992 = vlaneseq
        %v1993 = vshrl.u32 %v1992, 7
        %v1994 = vsub.s32 %v1991, %v1993
        %v1995 = vrot.slane %v1987, %v1994
        %v1997 = vunpack.c.l.s4 1966171168
        %v1998 = vunpack.c.0.s8 %v1997
        %v1999 = vlaneseq
        %v2000 = vshrl.u32 %v1999, 7
        %v2001 = vsub.s32 %v1998, %v2000
        %v2002 = vrot.slane %v1988, %v2001
        %v2003 = vcombine.low %v1995, %v2002
        %2005 = vst [vmem:[%s329] sm:$0xff] %v2003
        %s2006 = smul.u32 8, %s20
        %p2007 = scmp.lt.s32.totalorder %s2006, 15
        %s2008 = scalar_select %p2007, %s2006, 15
        %s2009 = scalar_lea.vmem %s7, %s2008
        // Predicated region
        $region72: #{extended_mask_rcnn_forward.1} parent=66 // pred_check
          %p2010 = pneg %p190
        $region73: #{extended_mask_rcnn_forward.1} parent=66 // pred_check_branch
          %2012 = sbr.rel (%p2010) target = $region75
        $region74: #{extended_mask_rcnn_forward.1} parent=66 // pred_region
          %s2013 = smul.u32 8, %s20
        $region75: #{extended_mask_rcnn_forward.1} parent=66 // pred_fallthru
          _
      $region67: #{extended_mask_rcnn_forward.1} parent=5 // pred_fallthru
        _
      %p2014 = scmp.le.s32.totalorder 2, %s15
      // Predicated region
      $region76: #{extended_mask_rcnn_forward.1} parent=5 // pred_check
        %p2015 = pneg %p2014
      $region77: #{extended_mask_rcnn_forward.1} parent=5 // pred_check_branch
        %2017 = sbr.rel (%p2015) target = $region79
      $region78: #{extended_mask_rcnn_forward.1} parent=5 // pred_region
        %s2018 = ssub.s32 %s15, 2
        // Predicated region
        $region80: #{extended_mask_rcnn_forward.1} parent=78 // pred_check
          %p2019 = pneg %p196
        $region81: #{extended_mask_rcnn_forward.1} parent=78 // pred_check_branch
          %2021 = sbr.rel (%p2019) target = $region83
        $region82: #{extended_mask_rcnn_forward.1} parent=78 // pred_region
          %s2022 = smul.u32 8, %s21
          %p2023 = scmp.lt.s32.totalorder %s2022, 15
          %s2024 = scalar_select %p2023, %s2022, 15
          %s2025 = scalar_lea.vmem %s7, %s2024
        $region83: #{extended_mask_rcnn_forward.1} parent=78 // pred_fallthru
          _
      $region79: #{extended_mask_rcnn_forward.1} parent=5 // pred_fallthru
        _
    $region6: #{extended_mask_rcnn_forward.1} parent=1 // loop_footer
      %s19 = sadd.s32 1, %s15
    $region7: #{extended_mask_rcnn_forward.1} parent=1 // loop_footer_branch
      %14 = sbr.rel target = $region3
    $region8: #{extended_mask_rcnn_forward.1} parent=1 // loop_exit
      _

</llo_original>
